<compile_context>
chip_gen: v7x
topology: tpu7x:2x2x1
jax: 0.10.0
libtpu: 0.0.40
codegen_flags: <defaults>
</compile_context>

<pallas_src>
import functools
import jax
import jax.numpy as jnp
from jax.experimental import pallas as pl
from jax.experimental.pallas import tpu as pltpu

PRELU_ALPHA = 0.25  # nn.PReLU() default init


def _round_up(x, m):
    return (x + m - 1) // m * m


# ----------------------------------------------------------------------------
# Pallas kernels
# ----------------------------------------------------------------------------
def _mm_kernel(*refs, activation, alpha, has_residual):
    """Fused matmul + bias (+ residual) + activation, f32 accumulation."""
    if has_residual:
        a_ref, w_ref, b_ref, r_ref, o_ref, acc_ref = refs
    else:
        a_ref, w_ref, b_ref, o_ref, acc_ref = refs
        r_ref = None
    k = pl.program_id(2)

    @pl.when(k == 0)
    def _():
        acc_ref[...] = jnp.zeros_like(acc_ref)

    acc_ref[...] += jnp.dot(a_ref[...], w_ref[...],
                            preferred_element_type=jnp.float32)

    @pl.when(k == pl.num_programs(2) - 1)
    def _():
        y = acc_ref[...] + b_ref[...]
        if has_residual:
            y = y + r_ref[...].astype(jnp.float32)
        if activation == "relu":
            y = jnp.maximum(y, 0.0)
        elif activation == "prelu":
            y = jnp.where(y > 0.0, y, alpha * y)
        o_ref[...] = y.astype(o_ref.dtype)


@functools.partial(jax.jit, static_argnames=("activation", "alpha", "out_dtype"))
def matmul_bias_act(a, w, b, activation="none", residual=None, *,
                    alpha=PRELU_ALPHA, out_dtype=jnp.bfloat16):
    """o = act(a @ w + b [+ residual]).  a:[M,K], w:[K,N], b:[N], residual:[M,N]."""
    M, K = a.shape
    N = w.shape[1]
    Mp, Kp, Np = _round_up(M, 128), _round_up(K, 128), _round_up(N, 128)
    TM = 256 if Mp % 256 == 0 else 128
    TK = 256 if Kp % 256 == 0 else 128
    TN = 256 if Np % 256 == 0 else 128

    a_p = jnp.pad(a.astype(jnp.bfloat16), ((0, Mp - M), (0, Kp - K)))
    w_p = jnp.pad(w.astype(jnp.bfloat16), ((0, Kp - K), (0, Np - N)))
    b_p = jnp.pad(b.astype(jnp.float32), (0, Np - N)).reshape(1, Np)

    has_residual = residual is not None
    inputs = [a_p, w_p, b_p]
    in_specs = [
        pl.BlockSpec((TM, TK), lambda i, j, k: (i, k)),
        pl.BlockSpec((TK, TN), lambda i, j, k: (k, j)),
        pl.BlockSpec((1, TN), lambda i, j, k: (0, j)),
    ]
    if has_residual:
        r_p = jnp.pad(residual.astype(jnp.bfloat16), ((0, Mp - M), (0, Np - N)))
        inputs.append(r_p)
        # index map ignores k -> block stays resident across the k axis.
        in_specs.append(pl.BlockSpec((TM, TN), lambda i, j, k: (i, j)))

    grid = (Mp // TM, Np // TN, Kp // TK)
    out = pl.pallas_call(
        functools.partial(_mm_kernel, activation=activation, alpha=alpha,
                          has_residual=has_residual),
        out_shape=jax.ShapeDtypeStruct((Mp, Np), out_dtype),
        grid_spec=pltpu.PrefetchScalarGridSpec(
            num_scalar_prefetch=0,
            grid=grid,
            in_specs=in_specs,
            out_specs=pl.BlockSpec((TM, TN), lambda i, j, k: (i, j)),
            scratch_shapes=[pltpu.VMEM((TM, TN), jnp.float32)],
        ),
        compiler_params=pltpu.CompilerParams(
            dimension_semantics=("parallel", "parallel", "arbitrary")),
    )(*inputs)
    return out[:M, :N]


def _conv3x3s1_kernel(x_ref, w_ref, b_ref, o_ref, acc_ref, *, activation):
    """3x3 stride-1 conv: whole padded NHWC input resident in VMEM.

    Accumulates the 9 shifted matmuls into an f32 scratch (no HBM im2col)."""
    B, HP, WP, Cin = x_ref.shape
    _, OH, OW, TN = o_ref.shape
    M = B * OH * OW

    x = x_ref[...]                       # full padded activation (tiny)
    acc_ref[...] = jnp.zeros_like(acc_ref)
    for di in range(3):
        for dj in range(3):
            t = di * 3 + dj
            xt = x[:, di:di + OH, dj:dj + OW, :].reshape(M, Cin)
            wt = w_ref[pl.ds(t * Cin, Cin), :]
            acc_ref[...] += jnp.dot(xt, wt, preferred_element_type=jnp.float32)

    y = acc_ref[...] + b_ref[...]
    if activation == "relu":
        y = jnp.maximum(y, 0.0)
    o_ref[...] = y.astype(o_ref.dtype).reshape(B, OH, OW, TN)


def conv3x3_s1(x, w, b, activation):
    """x: [N,H,W,Cin] bf16, w: [3,3,Cin,Cout] bf16 (BN folded), b: [Cout] f32."""
    N, H, W_, Cin = x.shape
    Cout = w.shape[-1]
    Cout_p = _round_up(Cout, 128)
    TN = 256 if Cout_p % 256 == 0 else 128

    xp = jnp.pad(x.astype(jnp.bfloat16), ((0, 0), (1, 1), (1, 1), (0, 0)))
    w_p = jnp.pad(w.astype(jnp.bfloat16),
                  ((0, 0), (0, 0), (0, 0), (0, Cout_p - Cout)))
    w_p = w_p.reshape(9 * Cin, Cout_p)
    b_p = jnp.pad(b.astype(jnp.float32), (0, Cout_p - Cout)).reshape(1, Cout_p)

    out = pl.pallas_call(
        functools.partial(_conv3x3s1_kernel, activation=activation),
        out_shape=jax.ShapeDtypeStruct((N, H, W_, Cout_p), jnp.bfloat16),
        grid_spec=pltpu.PrefetchScalarGridSpec(
            num_scalar_prefetch=0,
            grid=(Cout_p // TN,),
            in_specs=[
                pl.BlockSpec((N, H + 2, W_ + 2, Cin), lambda j: (0, 0, 0, 0)),
                pl.BlockSpec((9 * Cin, TN), lambda j: (0, j)),
                pl.BlockSpec((1, TN), lambda j: (0, j)),
            ],
            out_specs=pl.BlockSpec((N, H, W_, TN), lambda j: (0, 0, 0, j)),
            scratch_shapes=[pltpu.VMEM((N * H * W_, TN), jnp.float32)],
        ),
        compiler_params=pltpu.CompilerParams(dimension_semantics=("parallel",)),
    )(xp, w_p, b_p)
    if Cout_p != Cout:
        out = out[..., :Cout]
    return out


def _gap_kernel(x_ref, o_ref):
    o_ref[...] = jnp.mean(x_ref[...].astype(jnp.float32), axis=1,
                          keepdims=True).astype(o_ref.dtype)


def global_avg_pool(x):
    """x: [N, HW, C] -> [N, C] (mean over HW), f32 accumulation."""
    N, HW, C = x.shape
    out = pl.pallas_call(
        _gap_kernel,
        out_shape=jax.ShapeDtypeStruct((N, 1, C), x.dtype),
        grid=(N,),
        in_specs=[pl.BlockSpec((1, HW, C), lambda i: (i, 0, 0))],
        out_specs=pl.BlockSpec((1, 1, C), lambda i: (i, 0, 0)),
    )(x)
    return out.reshape(N, C)


# ----------------------------------------------------------------------------
# Conv dispatch (Pallas matmul / resident 3x3 kernel) + maxpool glue
# ----------------------------------------------------------------------------
def conv2d_bn_act(x, w, b, stride, pad, activation):
    """x: [N,H,W,Cin] NHWC bf16, w: [KH,KW,Cin,Cout] (BN folded), b: [Cout]."""
    KH, KW, Cin, Cout = w.shape
    N, H, W_, _ = x.shape

    if KH == 1 and KW == 1:
        # 1x1 conv: optional spatial subsample, then a single fused matmul.
        if stride > 1:
            x = x[:, ::stride, ::stride, :]
        Nn, Hh, Ww, _ = x.shape
        out = matmul_bias_act(x.reshape(Nn * Hh * Ww, Cin),
                              w.reshape(Cin, Cout), b, activation)
        return out.reshape(Nn, Hh, Ww, Cout)

    # Stride-1 3x3 convs with layout-friendly spatial dims: VMEM-resident
    # kernel (no im2col materialization in HBM).
    if (KH == 3 and KW == 3 and stride == 1 and pad == 1
            and W_ % 8 == 0 and (N * H * W_) % 8 == 0
            and N * (H + 2) * (W_ + 2) * Cin * 2 <= 4 * 1024 * 1024):
        return conv3x3_s1(x, w, b, activation)

    # General fallback (conv1 7x7/s2, stride-2 3x3, tiny-spatial 3x3):
    # im2col + fused matmul kernel.
    xp = jnp.pad(x, ((0, 0), (pad, pad), (pad, pad), (0, 0)))
    OH = (H + 2 * pad - KH) // stride + 1
    OW = (W_ + 2 * pad - KW) // stride + 1
    patches = []
    for i in range(KH):
        for j in range(KW):
            patches.append(
                xp[:, i:i + stride * OH:stride, j:j + stride * OW:stride, :])
    cols = patches[0] if len(patches) == 1 else jnp.concatenate(patches, -1)
    cols = cols.reshape(N * OH * OW, KH * KW * Cin)
    out = matmul_bias_act(cols, w.reshape(KH * KW * Cin, Cout), b, activation)
    return out.reshape(N, OH, OW, Cout)


def maxpool3x3s2(x):
    # TODO(synk): 3x3/s2 window-max kept in plain-JAX glue (9 shifted slices),
    # not a Pallas hot path in this model.
    N, H, W, C = x.shape
    xp = jnp.pad(x, ((0, 0), (1, 1), (1, 1), (0, 0)),
                 constant_values=-jnp.inf)
    OH = (H + 2 - 3) // 2 + 1
    OW = (W + 2 - 3) // 2 + 1
    out = None
    for i in range(3):
        for j in range(3):
            s = xp[:, i:i + 2 * OH:2, j:j + 2 * OW:2, :]
            out = s if out is None else jnp.maximum(out, s)
    return out


# ----------------------------------------------------------------------------
# Deterministic synthetic parameters (flow_resnet50 channel=10 + fc8 head)
# ----------------------------------------------------------------------------
class KeyGen:
    def __init__(self, key):
        self.key = key
        self.i = 0

    def __call__(self):
        self.i += 1
        return jax.random.fold_in(self.key, self.i)


def make_conv_bn(key, kh, kw, cin, cout):
    k1, k2, k3, k4, k5 = jax.random.split(key, 5)
    fan_in = kh * kw * cin
    w = jax.random.normal(k1, (kh, kw, cin, cout), jnp.float32) * (2.0 / fan_in) ** 0.5
    gamma = jax.random.uniform(k2, (cout,), jnp.float32, 0.8, 1.2)
    beta = jax.random.normal(k3, (cout,), jnp.float32) * 0.05
    mean = jax.random.normal(k4, (cout,), jnp.float32) * 0.05
    var = jax.random.uniform(k5, (cout,), jnp.float32, 0.8, 1.2)
    scale = gamma / jnp.sqrt(var + 1e-5)          # BN eval-mode fold
    return (w * scale).astype(jnp.bfloat16), (beta - mean * scale).astype(jnp.float32)


def make_linear(key, fan_in, fan_out):
    k1, k2 = jax.random.split(key)
    bound = 1.0 / (fan_in ** 0.5)
    w = jax.random.uniform(k1, (fan_in, fan_out), jnp.float32, -bound, bound)
    b = jax.random.uniform(k2, (fan_out,), jnp.float32, -bound, bound)
    return w.astype(jnp.bfloat16), b.astype(jnp.float32)


def build_flow_resnet50(kg, in_ch=10, num_classes=1000):
    p = {"conv1": make_conv_bn(kg(), 7, 7, in_ch, 64), "layers": []}
    in_c = 64
    for li, (nb, width) in enumerate([(3, 64), (4, 128), (6, 256), (3, 512)]):
        layer = []
        for bi in range(nb):
            blk = {
                "c1": make_conv_bn(kg(), 1, 1, in_c, width),
                "c2": make_conv_bn(kg(), 3, 3, width, width),
                "c3": make_conv_bn(kg(), 1, 1, width, width * 4),
            }
            if bi == 0:  # downsample branch (stride!=1 or channel change)
                blk["down"] = make_conv_bn(kg(), 1, 1, in_c, width * 4)
            layer.append(blk)
            in_c = width * 4
        p["layers"].append(layer)
    p["fc"] = make_linear(kg(), 2048, num_classes)
    return p


def build_fc8(kg):
    return {"l1": make_linear(kg(), 1000, 500),
            "l2": make_linear(kg(), 500, 64)}


# ----------------------------------------------------------------------------
# Forward passes
# ----------------------------------------------------------------------------
def resnet50_forward(x, p):
    w, b = p["conv1"]
    x = conv2d_bn_act(x, w, b, stride=2, pad=3, activation="relu")
    x = maxpool3x3s2(x)
    for li, layer in enumerate(p["layers"]):
        for bi, blk in enumerate(layer):
            stride = (1 if li == 0 else 2) if bi == 0 else 1
            identity = x
            w1, b1 = blk["c1"]
            out = conv2d_bn_act(x, w1, b1, 1, 0, "relu")
            w2, b2 = blk["c2"]
            out = conv2d_bn_act(out, w2, b2, stride, 1, "relu")
            if "down" in blk:
                wd, bd = blk["down"]
                identity = conv2d_bn_act(x, wd, bd, stride, 0, "none")
            # c3 (1x1 conv) with residual add + ReLU fused into the epilogue.
            N_, OH, OW, Cmid = out.shape
            w3, b3 = blk["c3"]
            C4 = w3.shape[-1]
            y = matmul_bias_act(out.reshape(N_ * OH * OW, Cmid),
                                w3.reshape(Cmid, C4), b3, "relu",
                                residual=identity.reshape(N_ * OH * OW, C4))
            x = y.reshape(N_, OH, OW, C4)
    N_, H, W_, C = x.shape
    feat = global_avg_pool(x.reshape(N_, H * W_, C))           # [N, 2048]
    wfc, bfc = p["fc"]
    return matmul_bias_act(feat, wfc, bfc, "none")              # [N, 1000]


def fc8_forward(x, p):
    w1, b1 = p["l1"]
    h = matmul_bias_act(x, w1, b1, "prelu", alpha=PRELU_ALPHA)
    w2, b2 = p["l2"]
    return matmul_bias_act(h, w2, b2, "none", out_dtype=jnp.float32)   # [N, 64]


@jax.jit
def branch_forward(x_nchw, res_params, fc8_params):
    # inputs are NCHW (PyTorch convention); kernels run in NHWC / bf16
    x = jnp.transpose(x_nchw, (0, 2, 3, 1)).astype(jnp.bfloat16)
    feat = resnet50_forward(x, res_params)
    return fc8_forward(feat, fc8_params)


def temporal_res_forward(ego_optical, front_optical, params):
    # same shapes / pytree structure for both branches -> one compiled executable
    ego_out = branch_forward(ego_optical, params["net1"]["res"], params["net1"]["fc8"])
    front_out = branch_forward(front_optical, params["net2"]["res"], params["net2"]["fc8"])
    return ego_out, front_out


# ----------------------------------------------------------------------------
if __name__ == "__main__":
    key = jax.random.PRNGKey(0)
    k_in1, k_in2, k_p1, k_p2 = jax.random.split(key, 4)

    B, C, H, W = 2, 10, 64, 64          # flow input: 10 stacked flow channels
    ego_optical = jax.random.normal(k_in1, (B, C, H, W), jnp.float32)
    front_optical = jax.random.normal(k_in2, (B, C, H, W), jnp.float32)

    params = {
        "net1": {"res": build_flow_resnet50(KeyGen(jax.random.fold_in(k_p1, 1))),
                 "fc8": build_fc8(KeyGen(jax.random.fold_in(k_p1, 2)))},
        "net2": {"res": build_flow_resnet50(KeyGen(jax.random.fold_in(k_p2, 1))),
                 "fc8": build_fc8(KeyGen(jax.random.fold_in(k_p2, 2)))},
    }

    ego_out, front_out = temporal_res_forward(ego_optical, front_optical, params)
    jax.block_until_ready((ego_out, front_out))

    assert ego_out.shape == (B, 64) and front_out.shape == (B, 64)
    assert ego_out.dtype == jnp.float32 and front_out.dtype == jnp.float32
    assert bool(jnp.all(jnp.isfinite(ego_out))) and bool(jnp.all(jnp.isfinite(front_out)))
    print("KERNEL_OK")
</pallas_src>

<mosaic_0001>
module attributes {stable_mosaic.version = 11 : i64} {
  func.func @_mm_kernel(%arg0: i32, %arg1: i32, %arg2: i32, %arg3: memref<256x256xbf16, #tpu.memory_space<vmem>>, %arg4: memref<256x128xbf16, #tpu.memory_space<vmem>>, %arg5: memref<1x128xf32, #tpu.memory_space<vmem>>, %arg6: memref<256x128xbf16, #tpu.memory_space<vmem>>, %arg7: memref<256x128xf32, #tpu.memory_space<vmem>>) attributes {dimension_semantics = [#tpu.dimension_semantics<parallel>, #tpu.dimension_semantics<parallel>, #tpu.dimension_semantics<arbitrary>], iteration_bounds = array<i64: 8, 1, 2>, scalar_prefetch = 0 : i64, scratch_operands = 1 : i64, tpu.core_type = #tpu.core_type<tc>, window_params = [{transform_indices = @transform_0, window_bounds = array<i64: 256, 256>}, {transform_indices = @transform_1, window_bounds = array<i64: 256, 128>}, {transform_indices = @transform_2, window_bounds = array<i64: 1, 128>}, {transform_indices = @transform_3, window_bounds = array<i64: 256, 128>}]} {
    %c0_i32 = arith.constant 0 : i32
    %0 = arith.cmpi eq, %arg2, %c0_i32 : i32
    %1 = arith.extui %0 : i1 to i32
    %c0_i32_0 = arith.constant 0 : i32
    %2 = arith.cmpi ne, %1, %c0_i32_0 : i32
    scf.if %2 {
      %cst_9 = arith.constant 0.000000e+00 : f32
      %12 = vector.broadcast %cst_9 : f32 to vector<256x128xf32>
      %c0_10 = arith.constant 0 : index
      %c0_11 = arith.constant 0 : index
      %13 = vector.load %arg7[%c0_10, %c0_11] : memref<256x128xf32, #tpu.memory_space<vmem>>, vector<256x128xf32>
      tpu.vector_store %arg7[%c0_10, %c0_11], %12 {strides = array<i32>} : memref<256x128xf32, #tpu.memory_space<vmem>>, vector<256x128xf32>,
    } else {
    }
    %c0 = arith.constant 0 : index
    %c0_1 = arith.constant 0 : index
    %3 = vector.load %arg7[%c0, %c0_1] : memref<256x128xf32, #tpu.memory_space<vmem>>, vector<256x128xf32>
    %c0_2 = arith.constant 0 : index
    %c0_3 = arith.constant 0 : index
    %4 = vector.load %arg3[%c0_2, %c0_3] : memref<256x256xbf16, #tpu.memory_space<vmem>>, vector<256x256xbf16>
    %c0_4 = arith.constant 0 : index
    %c0_5 = arith.constant 0 : index
    %5 = vector.load %arg4[%c0_4, %c0_5] : memref<256x128xbf16, #tpu.memory_space<vmem>>, vector<256x128xbf16>
    %cst = arith.constant dense<0.000000e+00> : vector<256x128xf32>
    %6 = tpu.matmul %4, %5, %cst {dimension_numbers = #tpu.dot_dimension_numbers<[1], [0], [0], [1], [0, 0, 1, 1], [], []>} : vector<256x256xbf16>, vector<256x128xbf16>, vector<256x128xf32> -> vector<256x128xf32>
    %7 = arith.addf %3, %6 : vector<256x128xf32>
    %c0_6 = arith.constant 0 : index
    %c0_7 = arith.constant 0 : index
    %8 = vector.load %arg7[%c0_6, %c0_7] : memref<256x128xf32, #tpu.memory_space<vmem>>, vector<256x128xf32>
    tpu.vector_store %arg7[%c0_6, %c0_7], %7 {strides = array<i32>} : memref<256x128xf32, #tpu.memory_space<vmem>>, vector<256x128xf32>,
    %c1_i32 = arith.constant 1 : i32
    %9 = arith.cmpi eq, %arg2, %c1_i32 : i32
    %10 = arith.extui %9 : i1 to i32
    %c0_i32_8 = arith.constant 0 : i32
    %11 = arith.cmpi ne, %10, %c0_i32_8 : i32
    scf.if %11 {
      %c0_9 = arith.constant 0 : index
      %c0_10 = arith.constant 0 : index
      %12 = vector.load %arg7[%c0_9, %c0_10] : memref<256x128xf32, #tpu.memory_space<vmem>>, vector<256x128xf32>
      %c0_11 = arith.constant 0 : index
      %c0_12 = arith.constant 0 : index
      %13 = vector.load %arg5[%c0_11, %c0_12] : memref<1x128xf32, #tpu.memory_space<vmem>>, vector<1x128xf32>
      %14 = vector.broadcast %13 : vector<1x128xf32> to vector<256x128xf32>
      %15 = arith.addf %12, %14 : vector<256x128xf32>
      %cst_13 = arith.constant 0.000000e+00 : f32
      %16 = vector.broadcast %cst_13 : f32 to vector<256x128xf32>
      %17 = arith.maximumf %15, %16 : vector<256x128xf32>
      %18 = arith.truncf %17 : vector<256x128xf32> to vector<256x128xbf16>
      %c0_14 = arith.constant 0 : index
      %c0_15 = arith.constant 0 : index
      %19 = vector.load %arg6[%c0_14, %c0_15] : memref<256x128xbf16, #tpu.memory_space<vmem>>, vector<256x128xbf16>
      tpu.vector_store %arg6[%c0_14, %c0_15], %18 {strides = array<i32>} : memref<256x128xbf16, #tpu.memory_space<vmem>>, vector<256x128xbf16>,
    } else {
    }
    return
  }
  func.func @transform_0(%arg0: i32, %arg1: i32, %arg2: i32) -> (i32, i32) {
    %c0_i32 = arith.constant 0 : i32
    return %arg0, %arg2 : i32, i32
  }
  func.func @transform_1(%arg0: i32, %arg1: i32, %arg2: i32) -> (i32, i32) {
    %c0_i32 = arith.constant 0 : i32
    return %arg2, %arg1 : i32, i32
  }
  func.func @transform_2(%arg0: i32, %arg1: i32, %arg2: i32) -> (i32, i32) {
    %c0_i32 = arith.constant 0 : i32
    %c0_i32_0 = arith.constant 0 : i32
    return %c0_i32, %arg1 : i32, i32
  }
  func.func @transform_3(%arg0: i32, %arg1: i32, %arg2: i32) -> (i32, i32) {
    %c0_i32 = arith.constant 0 : i32
    return %arg0, %arg1 : i32, i32
  }
}

</mosaic_0001>

<llo_original>
// kernel: matmul_bias_act.1
$region0: #{matmul_bias_act.1}
  #allocation0 [shape = 'u32[]', space=smem, size = 0x4, offset = 0x4, fixed_abs, tag = 'smem constant byte address 0x4 - core index']
  #allocation1 [shape = 'u32[144,128]{1,0:T(1,128)}', space=vmem, size = 0x12000, scoped, tag = 'internal scratch']
  #allocation2 [shape = 'f32[256,128]{1,0:T(8,128)}', space=vmem, size = 0x20000, scoped, tag = 'scratch operand']
  %s0 = inlined_call_operand.vmem [shape: bf16[2048,512], index: 0, kind: input, shape index: {}]
  %s1 = inlined_call_operand.vmem [shape: bf16[512,128], index: 1, kind: input, shape index: {}]
  %s2 = inlined_call_operand.vmem [shape: f32[1,128], index: 2, kind: input, shape index: {}]
  %s3 = inlined_call_operand.vmem [shape: bf16[2048,128], index: 3, kind: output, shape index: {}]
  %s4 = sld [smem:[#allocation0]]
  $region91: #{matmul_bias_act.1} parent=0
    _
  %s6 = ssub.s32 1, %s4
  %s7 = scalar_select 0, %s6, %s4
  $region1: #{matmul_bias_act.1} parent=0
    #allocation3 [shape = 'u8[262144]{0}', space=vmem, size = 0x40000, scoped, tag = 'input window, operand 0']
    loop: start=0, step=1, limit=18
    $region2: #{matmul_bias_act.1} parent=1 // loop_pre_header
      _
    $region3: #{matmul_bias_act.1} parent=1 // loop_header
      %s9 = sphi 0, %s13
      %p10 = scmp.ge.s32.totalorder %s9, 18
      %s16 = sphi 0, %s35
      %s17 = sphi 0, %s31
      %s18 = sphi 0, %s27
      %s19 = sphi 0, %s16
      %s20 = sphi 0, %s17
      %s21 = sphi 0, %s18
      %s22 = sphi 0, %s19
      %s23 = sphi 0, %s20
      %s24 = sphi 0, %s21
      %s40 = sphi 0, %s42
      %s43 = sphi 0, %s40
      %s44 = sphi 0, %s43
      %s60 = sphi 0, %s44
      %s68 = sphi 0, %s70
      %s71 = sphi 0, %s68
      %s72 = sphi 0, %s71
      %s88 = sphi 0, %s72
      %s94 = sphi 0, %s96
      %s97 = sphi 0, %s94
      %s98 = sphi 0, %s97
      %s114 = sphi 0, %s98
      %s122 = sphi 0, %s124
      %s125 = sphi 0, %s122
      %s126 = sphi 0, %s125
      %s142 = sphi 0, %s126
    $region4: #{matmul_bias_act.1} parent=1 // loop_header_branch
      %12 = sbr.rel (%p10) target = $region8
    $region5: #{matmul_bias_act.1} parent=1 // loop_body
      %s14 = ssub.s32 %s9, 1
      %s15 = ssub.s32 %s9, 2
      %s25 = sadd.s32 1, %s18
      %p26 = scmp.ge.s32.totalorder %s25, 2
      %s27 = scalar_select %p26, 0, %s25
      %s28 = sadd.s32 1, %s17
      %s29 = scalar_select %p26, %s28, %s17
      %p30 = scmp.ge.s32.totalorder %s29, 1
      %s31 = scalar_select %p30, 0, %s29
      %s32 = sadd.s32 1, %s16
      %s33 = scalar_select %p30, %s32, %s16
      %p34 = scmp.ge.s32.totalorder %s33, 8
      %s35 = scalar_select %p34, 0, %s33
      %s36 = ssub.s32 %s16, %s35
      %s37 = ssub.s32 %s18, %s27
      %s38 = sor.u32 %s36, %s37
      %p39 = scmp.eq.s32.totalorder %s38, 0
      %s41 = sadd.s32 %s40, 1
      %s42 = scalar_select %p39, %s40, %s41
      %p45 = pneg %p39
      %p46 = scmp.eq.s32.totalorder %s9, 15
      %p47 = por %p45, %p46
      %p48 = scmp.ne.s32.totalorder %s40, %s43
      %p49 = scmp.eq.s32.totalorder %s9, 0
      %p50 = por %p48, %p49
      %p51 = scmp.ne.s32.totalorder %s40, %s43
      %p52 = scmp.eq.s32.totalorder %s14, 15
      %p53 = por %p51, %p52
      %p54 = scmp.ne.s32.totalorder %s43, %s44
      %p55 = scmp.eq.s32.totalorder %s14, 0
      %p56 = por %p54, %p55
      %p57 = scmp.ne.s32.totalorder %s43, %s44
      %p58 = scmp.eq.s32.totalorder %s15, 15
      %p59 = por %p57, %p58
      %p61 = scmp.ne.s32.totalorder %s44, %s60
      %p62 = scmp.eq.s32.totalorder %s15, 0
      %p63 = por %p61, %p62
      %s64 = ssub.s32 %s18, %s27
      %s65 = ssub.s32 %s17, %s31
      %s66 = sor.u32 %s64, %s65
      %p67 = scmp.eq.s32.totalorder %s66, 0
      %s69 = sadd.s32 %s68, 1
      %s70 = scalar_select %p67, %s68, %s69
      %p73 = pneg %p67
      %p74 = scmp.eq.s32.totalorder %s9, 15
      %p75 = por %p73, %p74
      %p76 = scmp.ne.s32.totalorder %s68, %s71
      %p77 = scmp.eq.s32.totalorder %s9, 0
      %p78 = por %p76, %p77
      %p79 = scmp.ne.s32.totalorder %s68, %s71
      %p80 = scmp.eq.s32.totalorder %s14, 15
      %p81 = por %p79, %p80
      %p82 = scmp.ne.s32.totalorder %s71, %s72
      %p83 = scmp.eq.s32.totalorder %s14, 0
      %p84 = por %p82, %p83
      %p85 = scmp.ne.s32.totalorder %s71, %s72
      %p86 = scmp.eq.s32.totalorder %s15, 15
      %p87 = por %p85, %p86
      %p89 = scmp.ne.s32.totalorder %s72, %s88
      %p90 = scmp.eq.s32.totalorder %s15, 0
      %p91 = por %p89, %p90
      %s92 = ssub.s32 %s17, %s31
      %p93 = scmp.eq.s32.totalorder %s92, 0
      %s95 = sadd.s32 %s94, 1
      %s96 = scalar_select %p93, %s94, %s95
      %p99 = pneg %p93
      %p100 = scmp.eq.s32.totalorder %s9, 15
      %p101 = por %p99, %p100
      %p102 = scmp.ne.s32.totalorder %s94, %s97
      %p103 = scmp.eq.s32.totalorder %s9, 0
      %p104 = por %p102, %p103
      %p105 = scmp.ne.s32.totalorder %s94, %s97
      %p106 = scmp.eq.s32.totalorder %s14, 15
      %p107 = por %p105, %p106
      %p108 = scmp.ne.s32.totalorder %s97, %s98
      %p109 = scmp.eq.s32.totalorder %s14, 0
      %p110 = por %p108, %p109
      %p111 = scmp.ne.s32.totalorder %s97, %s98
      %p112 = scmp.eq.s32.totalorder %s15, 15
      %p113 = por %p111, %p112
      %p115 = scmp.ne.s32.totalorder %s98, %s114
      %p116 = scmp.eq.s32.totalorder %s15, 0
      %p117 = por %p115, %p116
      %s118 = ssub.s32 %s16, %s35
      %s119 = ssub.s32 %s17, %s31
      %s120 = sor.u32 %s118, %s119
      %p121 = scmp.eq.s32.totalorder %s120, 0
      %s123 = sadd.s32 %s122, 1
      %s124 = scalar_select %p121, %s122, %s123
      %p127 = pneg %p121
      %p128 = scmp.eq.s32.totalorder %s9, 15
      %p129 = por %p127, %p128
      %p130 = scmp.ne.s32.totalorder %s122, %s125
      %p131 = scmp.eq.s32.totalorder %s9, 0
      %p132 = por %p130, %p131
      %p133 = scmp.ne.s32.totalorder %s122, %s125
      %p134 = scmp.eq.s32.totalorder %s14, 15
      %p135 = por %p133, %p134
      %p136 = scmp.ne.s32.totalorder %s125, %s126
      %p137 = scmp.eq.s32.totalorder %s14, 0
      %p138 = por %p136, %p137
      %p139 = scmp.ne.s32.totalorder %s125, %s126
      %p140 = scmp.eq.s32.totalorder %s15, 15
      %p141 = por %p139, %p140
      %p143 = scmp.ne.s32.totalorder %s126, %s142
      %p144 = scmp.eq.s32.totalorder %s15, 0
      %p145 = por %p143, %p144
      %p146 = scmp.le.s32.totalorder 1, %s9
      %p147 = scmp.lt.s32.totalorder %s9, 17
      %p148 = pnand %p146, %p147
      %p149 = pneg %p148
      // Predicated region
      $region9: #{matmul_bias_act.1} parent=5 // pred_check
        _
      $region10: #{matmul_bias_act.1} parent=5 // pred_check_branch
        %151 = sbr.rel (%p148) target = $region12
      $region11: #{matmul_bias_act.1} parent=5 // pred_region
        %s152 = ssub.s32 %s9, 1
        // Predicated region
        $region13: #{matmul_bias_act.1} parent=11 // pred_check
          %p153 = pneg %p110
        $region14: #{matmul_bias_act.1} parent=11 // pred_check_branch
          %155 = sbr.rel (%p153) target = $region16
        $region15: #{matmul_bias_act.1} parent=11 // pred_region
          %p156 = scmp.lt.s32.totalorder %s20, 0
          %s157 = scalar_select %p156, %s20, 0
          %s158 = scalar_lea.vmem %s2, %s157
        $region16: #{matmul_bias_act.1} parent=11 // pred_fallthru
          _
      $region12: #{matmul_bias_act.1} parent=5 // pred_fallthru
        _
      %p159 = scmp.lt.s32.totalorder %s9, 16
      // Predicated region
      $region17: #{matmul_bias_act.1} parent=5 // pred_check
        %p160 = pneg %p159
      $region18: #{matmul_bias_act.1} parent=5 // pred_check_branch
        %162 = sbr.rel (%p160) target = $region20
      $region19: #{matmul_bias_act.1} parent=5 // pred_region
        // Predicated region
        $region21: #{matmul_bias_act.1} parent=19 // pred_check
          %p163 = pneg %p50
        $region22: #{matmul_bias_act.1} parent=19 // pred_check_branch
          %165 = sbr.rel (%p163) target = $region24
        $region23: #{matmul_bias_act.1} parent=19 // pred_region
          %s166 = sand.u32 %s40, 1
          %s167 = sand.u32 %s40, 1
          %s168 = smul.addr %s167, 256
          %s169 = scalar_lea.vmem [#allocation3], %s168
          %s170 = smul.u32 32, %s16
          %s171 = smul.u32 2, %s18
          %s172 = smul.addr %s170, 4
          %s173 = sadd.s32 %s171, %s172
          %s174 = smul.addr %s173, 4
          %s175 = scalar_lea.vmem %s0, %s174
          // Predicated region
          $region25: #{matmul_bias_act.1} parent=23 // pred_check
            _
          $region26: #{matmul_bias_act.1} parent=23 // pred_check_branch
            %177 = sbr.rel (0) target = $region28
          $region27: #{matmul_bias_act.1} parent=23 // pred_region
            // Predicated region
            $region29: #{matmul_bias_act.1} parent=27 // pred_check
              _
            $region30: #{matmul_bias_act.1} parent=27 // pred_check_branch
              %179 = sbr.rel (0) target = $region32
            $region31: #{matmul_bias_act.1} parent=27 // pred_region
              // Predicated region
              $region44: #{matmul_bias_act.1} parent=31 // pred_check
                _
              $region45: #{matmul_bias_act.1} parent=31 // pred_check_branch
                %256 = sbr.rel (0) target = $region47
              $region46: #{matmul_bias_act.1} parent=31 // pred_region
                loop: start=0, step=1, limit=1
                $region48: #{matmul_bias_act.1} parent=46 // loop_pre_header
                  _
                $region49: #{matmul_bias_act.1} parent=46 // loop_header
                  %s258 = sphi 0, %s262
                  %p259 = scmp.ge.s32.totalorder %s258, 1
                  %s263 = sphi %s175, %s175
                  %s264 = sphi %s169, %s169
                $region50: #{matmul_bias_act.1} parent=46 // loop_header_branch
                  %261 = sbr.rel (%p259) target = $region54
                $region51: #{matmul_bias_act.1} parent=46 // loop_body
                  %v265 = vld [vmem:[%s263] sm:$0xff]
                  %266 = vst [vmem:[%s264] sm:$0xff] %v265
                  %v267 = vld [vmem:[%s263 + $0x10] sm:$0xff]
                  %268 = vst [vmem:[%s264 + $0x8] sm:$0xff] %v267
                  %v269 = vld [vmem:[%s263 + $0x20] sm:$0xff]
                  %270 = vst [vmem:[%s264 + $0x10] sm:$0xff] %v269
                  %v271 = vld [vmem:[%s263 + $0x30] sm:$0xff]
                  %272 = vst [vmem:[%s264 + $0x18] sm:$0xff] %v271
                  %v273 = vld [vmem:[%s263 + $0x40] sm:$0xff]
                  %274 = vst [vmem:[%s264 + $0x20] sm:$0xff] %v273
                  %v275 = vld [vmem:[%s263 + $0x50] sm:$0xff]
                  %276 = vst [vmem:[%s264 + $0x28] sm:$0xff] %v275
                  %v277 = vld [vmem:[%s263 + $0x60] sm:$0xff]
                  %278 = vst [vmem:[%s264 + $0x30] sm:$0xff] %v277
                  %v279 = vld [vmem:[%s263 + $0x70] sm:$0xff]
                  %280 = vst [vmem:[%s264 + $0x38] sm:$0xff] %v279
                  %v281 = vld [vmem:[%s263 + $0x80] sm:$0xff]
                  %282 = vst [vmem:[%s264 + $0x40] sm:$0xff] %v281
                  %v283 = vld [vmem:[%s263 + $0x90] sm:$0xff]
                  %284 = vst [vmem:[%s264 + $0x48] sm:$0xff] %v283
                  %v285 = vld [vmem:[%s263 + $0xa0] sm:$0xff]
                  %286 = vst [vmem:[%s264 + $0x50] sm:$0xff] %v285
                  %v287 = vld [vmem:[%s263 + $0xb0] sm:$0xff]
                  %288 = vst [vmem:[%s264 + $0x58] sm:$0xff] %v287
                  %v289 = vld [vmem:[%s263 + $0xc0] sm:$0xff]
                  %290 = vst [vmem:[%s264 + $0x60] sm:$0xff] %v289
                  %v291 = vld [vmem:[%s263 + $0xd0] sm:$0xff]
                  %292 = vst [vmem:[%s264 + $0x68] sm:$0xff] %v291
                  %v293 = vld [vmem:[%s263 + $0xe0] sm:$0xff]
                  %294 = vst [vmem:[%s264 + $0x70] sm:$0xff] %v293
                  %v295 = vld [vmem:[%s263 + $0xf0] sm:$0xff]
                  %296 = vst [vmem:[%s264 + $0x78] sm:$0xff] %v295
                  %v297 = vld [vmem:[%s263 + $0x100] sm:$0xff]
                  %298 = vst [vmem:[%s264 + $0x80] sm:$0xff] %v297
                  %v299 = vld [vmem:[%s263 + $0x110] sm:$0xff]
                  %300 = vst [vmem:[%s264 + $0x88] sm:$0xff] %v299
                  %v301 = vld [vmem:[%s263 + $0x120] sm:$0xff]
                  %302 = vst [vmem:[%s264 + $0x90] sm:$0xff] %v301
                  %v303 = vld [vmem:[%s263 + $0x130] sm:$0xff]
                  %304 = vst [vmem:[%s264 + $0x98] sm:$0xff] %v303
                  %v305 = vld [vmem:[%s263 + $0x140] sm:$0xff]
                  %306 = vst [vmem:[%s264 + $0xa0] sm:$0xff] %v305
                  %v307 = vld [vmem:[%s263 + $0x150] sm:$0xff]
                  %308 = vst [vmem:[%s264 + $0xa8] sm:$0xff] %v307
                  %v309 = vld [vmem:[%s263 + $0x160] sm:$0xff]
                  %310 = vst [vmem:[%s264 + $0xb0] sm:$0xff] %v309
                  %v311 = vld [vmem:[%s263 + $0x170] sm:$0xff]
                  %312 = vst [vmem:[%s264 + $0xb8] sm:$0xff] %v311
                  %v313 = vld [vmem:[%s263 + $0x180] sm:$0xff]
                  %314 = vst [vmem:[%s264 + $0xc0] sm:$0xff] %v313
                  %v315 = vld [vmem:[%s263 + $0x190] sm:$0xff]
                  %316 = vst [vmem:[%s264 + $0xc8] sm:$0xff] %v315
                  %v317 = vld [vmem:[%s263 + $0x1a0] sm:$0xff]
                  %318 = vst [vmem:[%s264 + $0xd0] sm:$0xff] %v317
                  %v319 = vld [vmem:[%s263 + $0x1b0] sm:$0xff]
                  %320 = vst [vmem:[%s264 + $0xd8] sm:$0xff] %v319
                  %v321 = vld [vmem:[%s263 + $0x1c0] sm:$0xff]
                  %322 = vst [vmem:[%s264 + $0xe0] sm:$0xff] %v321
                  %v323 = vld [vmem:[%s263 + $0x1d0] sm:$0xff]
                  %324 = vst [vmem:[%s264 + $0xe8] sm:$0xff] %v323
                  %v325 = vld [vmem:[%s263 + $0x1e0] sm:$0xff]
                  %326 = vst [vmem:[%s264 + $0xf0] sm:$0xff] %v325
                  %v327 = vld [vmem:[%s263 + $0x1f0] sm:$0xff]
                  %328 = vst [vmem:[%s264 + $0xf8] sm:$0xff] %v327
                $region52: #{matmul_bias_act.1} parent=46 // loop_footer
                  %s262 = sadd.s32 1, %s258
                $region53: #{matmul_bias_act.1} parent=46 // loop_footer_branch
                  %257 = sbr.rel target = $region49
                $region54: #{matmul_bias_act.1} parent=46 // loop_exit
                  _
              $region47: #{matmul_bias_act.1} parent=31 // pred_fallthru
                _
              // Predicated region
              $region55: #{matmul_bias_act.1} parent=31 // pred_check
                _
              $region56: #{matmul_bias_act.1} parent=31 // pred_check_branch
                %330 = sbr.rel target = $region58
              $region57: #{matmul_bias_act.1} parent=31 // pred_region
                _
              $region58: #{matmul_bias_act.1} parent=31 // pred_fallthru
                _
            $region32: #{matmul_bias_act.1} parent=27 // pred_fallthru
              _
            // Predicated region
            $region33: #{matmul_bias_act.1} parent=27 // pred_check
              _
            $region34: #{matmul_bias_act.1} parent=27 // pred_check_branch
              %181 = sbr.rel target = $region36
            $region35: #{matmul_bias_act.1} parent=27 // pred_region
              loop: start=0, step=1, limit=1
              $region37: #{matmul_bias_act.1} parent=35 // loop_pre_header
                _
              $region38: #{matmul_bias_act.1} parent=35 // loop_header
                %s184 = sphi 0, %s188
                %p185 = scmp.ge.s32.totalorder %s184, 1
                %s189 = sphi %s175, %s175
                %s190 = sphi %s169, %s169
              $region39: #{matmul_bias_act.1} parent=35 // loop_header_branch
                %187 = sbr.rel (%p185) target = $region43
              $region40: #{matmul_bias_act.1} parent=35 // loop_body
                %v191 = vld [vmem:[%s189] sm:$0xff]
                %192 = vst [vmem:[%s190] sm:$0xff] %v191
                %v193 = vld [vmem:[%s189 + $0x10] sm:$0xff]
                %194 = vst [vmem:[%s190 + $0x8] sm:$0xff] %v193
                %v195 = vld [vmem:[%s189 + $0x20] sm:$0xff]
                %196 = vst [vmem:[%s190 + $0x10] sm:$0xff] %v195
                %v197 = vld [vmem:[%s189 + $0x30] sm:$0xff]
                %198 = vst [vmem:[%s190 + $0x18] sm:$0xff] %v197
                %v199 = vld [vmem:[%s189 + $0x40] sm:$0xff]
                %200 = vst [vmem:[%s190 + $0x20] sm:$0xff] %v199
                %v201 = vld [vmem:[%s189 + $0x50] sm:$0xff]
                %202 = vst [vmem:[%s190 + $0x28] sm:$0xff] %v201
                %v203 = vld [vmem:[%s189 + $0x60] sm:$0xff]
                %204 = vst [vmem:[%s190 + $0x30] sm:$0xff] %v203
                %v205 = vld [vmem:[%s189 + $0x70] sm:$0xff]
                %206 = vst [vmem:[%s190 + $0x38] sm:$0xff] %v205
                %v207 = vld [vmem:[%s189 + $0x80] sm:$0xff]
                %208 = vst [vmem:[%s190 + $0x40] sm:$0xff] %v207
                %v209 = vld [vmem:[%s189 + $0x90] sm:$0xff]
                %210 = vst [vmem:[%s190 + $0x48] sm:$0xff] %v209
                %v211 = vld [vmem:[%s189 + $0xa0] sm:$0xff]
                %212 = vst [vmem:[%s190 + $0x50] sm:$0xff] %v211
                %v213 = vld [vmem:[%s189 + $0xb0] sm:$0xff]
                %214 = vst [vmem:[%s190 + $0x58] sm:$0xff] %v213
                %v215 = vld [vmem:[%s189 + $0xc0] sm:$0xff]
                %216 = vst [vmem:[%s190 + $0x60] sm:$0xff] %v215
                %v217 = vld [vmem:[%s189 + $0xd0] sm:$0xff]
                %218 = vst [vmem:[%s190 + $0x68] sm:$0xff] %v217
                %v219 = vld [vmem:[%s189 + $0xe0] sm:$0xff]
                %220 = vst [vmem:[%s190 + $0x70] sm:$0xff] %v219
                %v221 = vld [vmem:[%s189 + $0xf0] sm:$0xff]
                %222 = vst [vmem:[%s190 + $0x78] sm:$0xff] %v221
                %v223 = vld [vmem:[%s189 + $0x100] sm:$0xff]
                %224 = vst [vmem:[%s190 + $0x80] sm:$0xff] %v223
                %v225 = vld [vmem:[%s189 + $0x110] sm:$0xff]
                %226 = vst [vmem:[%s190 + $0x88] sm:$0xff] %v225
                %v227 = vld [vmem:[%s189 + $0x120] sm:$0xff]
                %228 = vst [vmem:[%s190 + $0x90] sm:$0xff] %v227
                %v229 = vld [vmem:[%s189 + $0x130] sm:$0xff]
                %230 = vst [vmem:[%s190 + $0x98] sm:$0xff] %v229
                %v231 = vld [vmem:[%s189 + $0x140] sm:$0xff]
                %232 = vst [vmem:[%s190 + $0xa0] sm:$0xff] %v231
                %v233 = vld [vmem:[%s189 + $0x150] sm:$0xff]
                %234 = vst [vmem:[%s190 + $0xa8] sm:$0xff] %v233
                %v235 = vld [vmem:[%s189 + $0x160] sm:$0xff]
                %236 = vst [vmem:[%s190 + $0xb0] sm:$0xff] %v235
                %v237 = vld [vmem:[%s189 + $0x170] sm:$0xff]
                %238 = vst [vmem:[%s190 + $0xb8] sm:$0xff] %v237
                %v239 = vld [vmem:[%s189 + $0x180] sm:$0xff]
                %240 = vst [vmem:[%s190 + $0xc0] sm:$0xff] %v239
                %v241 = vld [vmem:[%s189 + $0x190] sm:$0xff]
                %242 = vst [vmem:[%s190 + $0xc8] sm:$0xff] %v241
                %v243 = vld [vmem:[%s189 + $0x1a0] sm:$0xff]
                %244 = vst [vmem:[%s190 + $0xd0] sm:$0xff] %v243
                %v245 = vld [vmem:[%s189 + $0x1b0] sm:$0xff]
                %246 = vst [vmem:[%s190 + $0xd8] sm:$0xff] %v245
                %v247 = vld [vmem:[%s189 + $0x1c0] sm:$0xff]
                %248 = vst [vmem:[%s190 + $0xe0] sm:$0xff] %v247
                %v249 = vld [vmem:[%s189 + $0x1d0] sm:$0xff]
                %250 = vst [vmem:[%s190 + $0xe8] sm:$0xff] %v249
                %v251 = vld [vmem:[%s189 + $0x1e0] sm:$0xff]
                %252 = vst [vmem:[%s190 + $0xf0] sm:$0xff] %v251
                %v253 = vld [vmem:[%s189 + $0x1f0] sm:$0xff]
                %254 = vst [vmem:[%s190 + $0xf8] sm:$0xff] %v253
              $region41: #{matmul_bias_act.1} parent=35 // loop_footer
                %s188 = sadd.s32 1, %s184
              $region42: #{matmul_bias_act.1} parent=35 // loop_footer_branch
                %183 = sbr.rel target = $region38
              $region43: #{matmul_bias_act.1} parent=35 // loop_exit
                _
            $region36: #{matmul_bias_act.1} parent=27 // pred_fallthru
              _
          $region28: #{matmul_bias_act.1} parent=23 // pred_fallthru
            _
          %331 = vnop
        $region24: #{matmul_bias_act.1} parent=19 // pred_fallthru
          _
        // Predicated region
        $region59: #{matmul_bias_act.1} parent=19 // pred_check
          %p332 = pneg %p78
        $region60: #{matmul_bias_act.1} parent=19 // pred_check_branch
          %334 = sbr.rel (%p332) target = $region62
        $region61: #{matmul_bias_act.1} parent=19 // pred_region
          %s335 = smul.u32 32, %s18
          %p336 = scmp.lt.s32.totalorder %s335, 63
          %s337 = scalar_select %p336, %s335, 63
          %p338 = scmp.lt.s32.totalorder %s17, 0
          %s339 = scalar_select %p338, %s17, 0
          %s340 = sadd.s32 %s339, %s337
          %s341 = smul.addr %s340, 4
          %s342 = scalar_lea.vmem %s1, %s341
          %s343 = smul.u32 32, %s18
        $region62: #{matmul_bias_act.1} parent=19 // pred_fallthru
          _
      $region20: #{matmul_bias_act.1} parent=5 // pred_fallthru
        _
      %p344 = scmp.le.s32.totalorder 1, %s9
      %p345 = scmp.lt.s32.totalorder %s9, 17
      %p346 = pnand %p344, %p345
      %p347 = pneg %p346
      // Predicated region
      $region63: #{matmul_bias_act.1} parent=5 // pred_check
        _
      $region64: #{matmul_bias_act.1} parent=5 // pred_check_branch
        %349 = sbr.rel (%p346) target = $region66
      $region65: #{matmul_bias_act.1} parent=5 // pred_region
        %s350 = ssub.s32 %s9, 1
        %s351 = sand.u32 %s43, 1
        %s352 = sand.u32 %s43, 1
        %s353 = smul.addr %s352, 256
        %s354 = scalar_lea.vmem [#allocation3], %s353
        // Predicated region
        $region67: #{matmul_bias_act.1} parent=65 // pred_check
          %p355 = pneg %p56
        $region68: #{matmul_bias_act.1} parent=65 // pred_check_branch
          %357 = sbr.rel (%p355) target = $region70
        $region69: #{matmul_bias_act.1} parent=65 // pred_region
          _
        $region70: #{matmul_bias_act.1} parent=65 // pred_fallthru
          _
        %s358 = sand.u32 %s43, 1
        %s359 = sand.u32 %s43, 1
        %s360 = smul.addr %s359, 256
        %s361 = scalar_lea.vmem [#allocation3], %s360
        %p362 = pneg %p56
        %p363 = pneg %p53
        %s364 = smul.u32 32, %s21
        %p365 = scmp.lt.s32.totalorder %s364, 63
        %s366 = scalar_select %p365, %s364, 63
        %p367 = scmp.lt.s32.totalorder %s20, 0
        %s368 = scalar_select %p367, %s20, 0
        %s369 = sadd.s32 %s368, %s366
        %s370 = smul.addr %s369, 4
        %s371 = scalar_lea.vmem %s1, %s370
        %p372 = pneg %p84
        %p373 = pneg %p81
        %p374 = scmp.lt.s32.totalorder %s20, 0
        %s375 = scalar_select %p374, %s20, 0
        %s376 = scalar_lea.vmem %s2, %s375
        %p377 = pneg %p110
        %p378 = pneg %p107
        %p379 = pneg %p138
        %p380 = pneg %p135
        %s381 = smul.u32 32, %s19
        %p382 = scmp.lt.s32.totalorder %s381, 255
        %s383 = scalar_select %p382, %s381, 255
        %p384 = scmp.lt.s32.totalorder %s20, 0
        %s385 = scalar_select %p384, %s20, 0
        %s386 = sadd.s32 %s385, %s383
        %s387 = smul.addr %s386, 4
        %s388 = scalar_lea.vmem %s3, %s387
        %s389 = smul.u32 32, %s19
        %s390 = smul.u32 2, %s21
        %s391 = smul.u32 32, %s21
        %p392 = scmp.lt.s32.totalorder %s391, 63
        %s393 = scalar_select %p392, %s391, 63
        %p394 = scmp.lt.s32.totalorder %s20, 0
        %s395 = scalar_select %p394, %s20, 0
        %s396 = sadd.s32 %s395, %s393
        %s397 = smul.addr %s396, 4
        %s398 = scalar_lea.vmem %s1, %s397
        %s399 = smul.u32 32, %s21
        %p400 = scmp.lt.s32.totalorder %s20, 0
        %s401 = scalar_select %p400, %s20, 0
        %s402 = scalar_lea.vmem %s2, %s401
        %s403 = smul.u32 32, %s19
        %p404 = scmp.lt.s32.totalorder %s403, 255
        %s405 = scalar_select %p404, %s403, 255
        %p406 = scmp.lt.s32.totalorder %s20, 0
        %s407 = scalar_select %p406, %s20, 0
        %s408 = sadd.s32 %s407, %s405
        %s409 = smul.addr %s408, 4
        %s410 = scalar_lea.vmem %s3, %s409
        %s411 = smul.u32 32, %s19
        %p413 = scmp.eq.s32.totalorder %s21, 0
        // Predicated region
        $region71: #{matmul_bias_act.1} parent=65 // pred_check
          %p414 = pneg %p413
        $region72: #{matmul_bias_act.1} parent=65 // pred_check_branch
          %416 = sbr.rel (%p414) target = $region74
        $region73: #{matmul_bias_act.1} parent=65 // pred_region
          %417 = vst [vmem:[#allocation2] sm:$0xff] 0.0
          %418 = vst [vmem:[#allocation2 + $0x8] sm:$0xff] 0.0
          %419 = vst [vmem:[#allocation2 + $0x10] sm:$0xff] 0.0
          %420 = vst [vmem:[#allocation2 + $0x18] sm:$0xff] 0.0
          %421 = vst [vmem:[#allocation2 + $0x20] sm:$0xff] 0.0
          %422 = vst [vmem:[#allocation2 + $0x28] sm:$0xff] 0.0
          %423 = vst [vmem:[#allocation2 + $0x30] sm:$0xff] 0.0
          %424 = vst [vmem:[#allocation2 + $0x38] sm:$0xff] 0.0
          %425 = vst [vmem:[#allocation2 + $0x40] sm:$0xff] 0.0
          %426 = vst [vmem:[#allocation2 + $0x48] sm:$0xff] 0.0
          %427 = vst [vmem:[#allocation2 + $0x50] sm:$0xff] 0.0
          %428 = vst [vmem:[#allocation2 + $0x58] sm:$0xff] 0.0
          %429 = vst [vmem:[#allocation2 + $0x60] sm:$0xff] 0.0
          %430 = vst [vmem:[#allocation2 + $0x68] sm:$0xff] 0.0
          %431 = vst [vmem:[#allocation2 + $0x70] sm:$0xff] 0.0
          %432 = vst [vmem:[#allocation2 + $0x78] sm:$0xff] 0.0
          %433 = vst [vmem:[#allocation2 + $0x80] sm:$0xff] 0.0
          %434 = vst [vmem:[#allocation2 + $0x88] sm:$0xff] 0.0
          %435 = vst [vmem:[#allocation2 + $0x90] sm:$0xff] 0.0
          %436 = vst [vmem:[#allocation2 + $0x98] sm:$0xff] 0.0
          %437 = vst [vmem:[#allocation2 + $0xa0] sm:$0xff] 0.0
          %438 = vst [vmem:[#allocation2 + $0xa8] sm:$0xff] 0.0
          %439 = vst [vmem:[#allocation2 + $0xb0] sm:$0xff] 0.0
          %440 = vst [vmem:[#allocation2 + $0xb8] sm:$0xff] 0.0
          %441 = vst [vmem:[#allocation2 + $0xc0] sm:$0xff] 0.0
          %442 = vst [vmem:[#allocation2 + $0xc8] sm:$0xff] 0.0
          %443 = vst [vmem:[#allocation2 + $0xd0] sm:$0xff] 0.0
          %444 = vst [vmem:[#allocation2 + $0xd8] sm:$0xff] 0.0
          %445 = vst [vmem:[#allocation2 + $0xe0] sm:$0xff] 0.0
          %446 = vst [vmem:[#allocation2 + $0xe8] sm:$0xff] 0.0
          %447 = vst [vmem:[#allocation2 + $0xf0] sm:$0xff] 0.0
          %448 = vst [vmem:[#allocation2 + $0xf8] sm:$0xff] 0.0
        $region74: #{matmul_bias_act.1} parent=65 // pred_fallthru
          _
        %v449 = vld [vmem:[#allocation2] sm:$0xff]
        %v450 = vld [vmem:[#allocation2 + $0x8] sm:$0xff]
        %v451 = vld [vmem:[#allocation2 + $0x10] sm:$0xff]
        %v452 = vld [vmem:[#allocation2 + $0x18] sm:$0xff]
        %v453 = vld [vmem:[#allocation2 + $0x20] sm:$0xff]
        %v454 = vld [vmem:[#allocation2 + $0x28] sm:$0xff]
        %v455 = vld [vmem:[#allocation2 + $0x30] sm:$0xff]
        %v456 = vld [vmem:[#allocation2 + $0x38] sm:$0xff]
        %v457 = vld [vmem:[#allocation2 + $0x40] sm:$0xff]
        %v458 = vld [vmem:[#allocation2 + $0x48] sm:$0xff]
        %v459 = vld [vmem:[#allocation2 + $0x50] sm:$0xff]
        %v460 = vld [vmem:[#allocation2 + $0x58] sm:$0xff]
        %v461 = vld [vmem:[#allocation2 + $0x60] sm:$0xff]
        %v462 = vld [vmem:[#allocation2 + $0x68] sm:$0xff]
        %v463 = vld [vmem:[#allocation2 + $0x70] sm:$0xff]
        %v464 = vld [vmem:[#allocation2 + $0x78] sm:$0xff]
        %v465 = vld [vmem:[#allocation2 + $0x80] sm:$0xff]
        %v466 = vld [vmem:[#allocation2 + $0x88] sm:$0xff]
        %v467 = vld [vmem:[#allocation2 + $0x90] sm:$0xff]
        %v468 = vld [vmem:[#allocation2 + $0x98] sm:$0xff]
        %v469 = vld [vmem:[#allocation2 + $0xa0] sm:$0xff]
        %v470 = vld [vmem:[#allocation2 + $0xa8] sm:$0xff]
        %v471 = vld [vmem:[#allocation2 + $0xb0] sm:$0xff]
        %v472 = vld [vmem:[#allocation2 + $0xb8] sm:$0xff]
        %v473 = vld [vmem:[#allocation2 + $0xc0] sm:$0xff]
        %v474 = vld [vmem:[#allocation2 + $0xc8] sm:$0xff]
        %v475 = vld [vmem:[#allocation2 + $0xd0] sm:$0xff]
        %v476 = vld [vmem:[#allocation2 + $0xd8] sm:$0xff]
        %v477 = vld [vmem:[#allocation2 + $0xe0] sm:$0xff]
        %v478 = vld [vmem:[#allocation2 + $0xe8] sm:$0xff]
        %v479 = vld [vmem:[#allocation2 + $0xf0] sm:$0xff]
        %v480 = vld [vmem:[#allocation2 + $0xf8] sm:$0xff]
        %v481 = vld [vmem:[%s354] sm:$0xff]
        %v482 = vld [vmem:[%s354 + $0x8] sm:$0xff]
        %v483 = vld [vmem:[%s354 + $0x10] sm:$0xff]
        %v484 = vld [vmem:[%s354 + $0x18] sm:$0xff]
        %v485 = vld [vmem:[%s354 + $0x20] sm:$0xff]
        %v486 = vld [vmem:[%s354 + $0x28] sm:$0xff]
        %v487 = vld [vmem:[%s354 + $0x30] sm:$0xff]
        %v488 = vld [vmem:[%s354 + $0x38] sm:$0xff]
        %v489 = vld [vmem:[%s354 + $0x40] sm:$0xff]
        %v490 = vld [vmem:[%s354 + $0x48] sm:$0xff]
        %v491 = vld [vmem:[%s354 + $0x50] sm:$0xff]
        %v492 = vld [vmem:[%s354 + $0x58] sm:$0xff]
        %v493 = vld [vmem:[%s354 + $0x60] sm:$0xff]
        %v494 = vld [vmem:[%s354 + $0x68] sm:$0xff]
        %v495 = vld [vmem:[%s354 + $0x70] sm:$0xff]
        %v496 = vld [vmem:[%s354 + $0x78] sm:$0xff]
        %v497 = vld [vmem:[%s354 + $0x80] sm:$0xff]
        %v498 = vld [vmem:[%s354 + $0x88] sm:$0xff]
        %v499 = vld [vmem:[%s354 + $0x90] sm:$0xff]
        %v500 = vld [vmem:[%s354 + $0x98] sm:$0xff]
        %v501 = vld [vmem:[%s354 + $0xa0] sm:$0xff]
        %v502 = vld [vmem:[%s354 + $0xa8] sm:$0xff]
        %v503 = vld [vmem:[%s354 + $0xb0] sm:$0xff]
        %v504 = vld [vmem:[%s354 + $0xb8] sm:$0xff]
        %v505 = vld [vmem:[%s354 + $0xc0] sm:$0xff]
        %v506 = vld [vmem:[%s354 + $0xc8] sm:$0xff]
        %v507 = vld [vmem:[%s354 + $0xd0] sm:$0xff]
        %v508 = vld [vmem:[%s354 + $0xd8] sm:$0xff]
        %v509 = vld [vmem:[%s354 + $0xe0] sm:$0xff]
        %v510 = vld [vmem:[%s354 + $0xe8] sm:$0xff]
        %v511 = vld [vmem:[%s354 + $0xf0] sm:$0xff]
        %v512 = vld [vmem:[%s354 + $0xf8] sm:$0xff]
        %v513 = vld [vmem:[%s398] sm:$0xf]
        %v514 = vld [vmem:[%s398 + $0x4] sm:$0xf]
        %v515 = vld [vmem:[%s398 + $0x8] sm:$0xf]
        %v516 = vld [vmem:[%s398 + $0xc] sm:$0xf]
        %v517 = vld [vmem:[%s398 + $0x10] sm:$0xf]
        %v518 = vld [vmem:[%s398 + $0x14] sm:$0xf]
        %v519 = vld [vmem:[%s398 + $0x18] sm:$0xf]
        %v520 = vld [vmem:[%s398 + $0x1c] sm:$0xf]
        %v521 = vld [vmem:[%s398 + $0x20] sm:$0xf]
        %v522 = vld [vmem:[%s398 + $0x24] sm:$0xf]
        %v523 = vld [vmem:[%s398 + $0x28] sm:$0xf]
        %v524 = vld [vmem:[%s398 + $0x2c] sm:$0xf]
        %v525 = vld [vmem:[%s398 + $0x30] sm:$0xf]
        %v526 = vld [vmem:[%s398 + $0x34] sm:$0xf]
        %v527 = vld [vmem:[%s398 + $0x38] sm:$0xf]
        %v528 = vld [vmem:[%s398 + $0x3c] sm:$0xf]
        %v529 = vld [vmem:[%s398 + $0x40] sm:$0xf]
        %v530 = vld [vmem:[%s398 + $0x44] sm:$0xf]
        %v531 = vld [vmem:[%s398 + $0x48] sm:$0xf]
        %v532 = vld [vmem:[%s398 + $0x4c] sm:$0xf]
        %v533 = vld [vmem:[%s398 + $0x50] sm:$0xf]
        %v534 = vld [vmem:[%s398 + $0x54] sm:$0xf]
        %v535 = vld [vmem:[%s398 + $0x58] sm:$0xf]
        %v536 = vld [vmem:[%s398 + $0x5c] sm:$0xf]
        %v537 = vld [vmem:[%s398 + $0x60] sm:$0xf]
        %v538 = vld [vmem:[%s398 + $0x64] sm:$0xf]
        %v539 = vld [vmem:[%s398 + $0x68] sm:$0xf]
        %v540 = vld [vmem:[%s398 + $0x6c] sm:$0xf]
        %v541 = vld [vmem:[%s398 + $0x70] sm:$0xf]
        %v542 = vld [vmem:[%s398 + $0x74] sm:$0xf]
        %v543 = vld [vmem:[%s398 + $0x78] sm:$0xf]
        %v544 = vld [vmem:[%s398 + $0x7c] sm:$0xf]
        %v577 = vunpack.c.l.b16 %v481
        %v578 = vunpack.c.h.b16 %v481
        %v579 = vunpack.c.l.b16 %v482
        %v580 = vunpack.c.h.b16 %v482
        %v581 = vunpack.c.l.b16 %v483
        %v582 = vunpack.c.h.b16 %v483
        %v583 = vunpack.c.l.b16 %v484
        %v584 = vunpack.c.h.b16 %v484
        %v585 = vunpack.c.l.b16 %v485
        %v586 = vunpack.c.h.b16 %v485
        %v587 = vunpack.c.l.b16 %v486
        %v588 = vunpack.c.h.b16 %v486
        %v589 = vunpack.c.l.b16 %v487
        %v590 = vunpack.c.h.b16 %v487
        %v591 = vunpack.c.l.b16 %v488
        %v592 = vunpack.c.h.b16 %v488
        %v593 = vunpack.c.l.b16 %v489
        %v594 = vunpack.c.h.b16 %v489
        %v595 = vunpack.c.l.b16 %v490
        %v596 = vunpack.c.h.b16 %v490
        %v597 = vunpack.c.l.b16 %v491
        %v598 = vunpack.c.h.b16 %v491
        %v599 = vunpack.c.l.b16 %v492
        %v600 = vunpack.c.h.b16 %v492
        %v601 = vunpack.c.l.b16 %v493
        %v602 = vunpack.c.h.b16 %v493
        %v603 = vunpack.c.l.b16 %v494
        %v604 = vunpack.c.h.b16 %v494
        %v605 = vunpack.c.l.b16 %v495
        %v606 = vunpack.c.h.b16 %v495
        %v607 = vunpack.c.l.b16 %v496
        %v608 = vunpack.c.h.b16 %v496
        %v609 = vunpack.c.l.b16 %v497
        %v610 = vunpack.c.h.b16 %v497
        %v611 = vunpack.c.l.b16 %v498
        %v612 = vunpack.c.h.b16 %v498
        %v613 = vunpack.c.l.b16 %v499
        %v614 = vunpack.c.h.b16 %v499
        %v615 = vunpack.c.l.b16 %v500
        %v616 = vunpack.c.h.b16 %v500
        %v617 = vunpack.c.l.b16 %v501
        %v618 = vunpack.c.h.b16 %v501
        %v619 = vunpack.c.l.b16 %v502
        %v620 = vunpack.c.h.b16 %v502
        %v621 = vunpack.c.l.b16 %v503
        %v622 = vunpack.c.h.b16 %v503
        %v623 = vunpack.c.l.b16 %v504
        %v624 = vunpack.c.h.b16 %v504
        %v625 = vunpack.c.l.b16 %v505
        %v626 = vunpack.c.h.b16 %v505
        %v627 = vunpack.c.l.b16 %v506
        %v628 = vunpack.c.h.b16 %v506
        %v629 = vunpack.c.l.b16 %v507
        %v630 = vunpack.c.h.b16 %v507
        %v631 = vunpack.c.l.b16 %v508
        %v632 = vunpack.c.h.b16 %v508
        %v633 = vunpack.c.l.b16 %v509
        %v634 = vunpack.c.h.b16 %v509
        %v635 = vunpack.c.l.b16 %v510
        %v636 = vunpack.c.h.b16 %v510
        %v637 = vunpack.c.l.b16 %v511
        %v638 = vunpack.c.h.b16 %v511
        %v639 = vunpack.c.l.b16 %v512
        %v640 = vunpack.c.h.b16 %v512
        %v641 = vpack.c.b16 %v579, %v577
        %v642 = vpack.c.b16 %v580, %v578
        %v643 = vpack.c.b16 %v583, %v581
        %v644 = vpack.c.b16 %v584, %v582
        %v645 = vpack.c.b16 %v587, %v585
        %v646 = vpack.c.b16 %v588, %v586
        %v647 = vpack.c.b16 %v591, %v589
        %v648 = vpack.c.b16 %v592, %v590
        %v649 = vpack.c.b16 %v595, %v593
        %v650 = vpack.c.b16 %v596, %v594
        %v651 = vpack.c.b16 %v599, %v597
        %v652 = vpack.c.b16 %v600, %v598
        %v653 = vpack.c.b16 %v603, %v601
        %v654 = vpack.c.b16 %v604, %v602
        %v655 = vpack.c.b16 %v607, %v605
        %v656 = vpack.c.b16 %v608, %v606
        %v657 = vpack.c.b16 %v611, %v609
        %v658 = vpack.c.b16 %v612, %v610
        %v659 = vpack.c.b16 %v615, %v613
        %v660 = vpack.c.b16 %v616, %v614
        %v661 = vpack.c.b16 %v619, %v617
        %v662 = vpack.c.b16 %v620, %v618
        %v663 = vpack.c.b16 %v623, %v621
        %v664 = vpack.c.b16 %v624, %v622
        %v665 = vpack.c.b16 %v627, %v625
        %v666 = vpack.c.b16 %v628, %v626
        %v667 = vpack.c.b16 %v631, %v629
        %v668 = vpack.c.b16 %v632, %v630
        %v669 = vpack.c.b16 %v635, %v633
        %v670 = vpack.c.b16 %v636, %v634
        %v671 = vpack.c.b16 %v639, %v637
        %v672 = vpack.c.b16 %v640, %v638
        %v737 = vunpack.c.l.b16 %v513
        %v738 = vunpack.c.l.b16 %v514
        %v739 = vunpack.c.l.b16 %v515
        %v740 = vunpack.c.l.b16 %v516
        %v741 = vunpack.c.l.b16 %v517
        %v742 = vunpack.c.l.b16 %v518
        %v743 = vunpack.c.l.b16 %v519
        %v744 = vunpack.c.l.b16 %v520
        %v745 = vunpack.c.l.b16 %v521
        %v746 = vunpack.c.l.b16 %v522
        %v747 = vunpack.c.l.b16 %v523
        %v748 = vunpack.c.l.b16 %v524
        %v749 = vunpack.c.l.b16 %v525
        %v750 = vunpack.c.l.b16 %v526
        %v751 = vunpack.c.l.b16 %v527
        %v752 = vunpack.c.l.b16 %v528
        %v753 = vunpack.c.l.b16 %v529
        %v754 = vunpack.c.l.b16 %v530
        %v755 = vunpack.c.l.b16 %v531
        %v756 = vunpack.c.l.b16 %v532
        %v757 = vunpack.c.l.b16 %v533
        %v758 = vunpack.c.l.b16 %v534
        %v759 = vunpack.c.l.b16 %v535
        %v760 = vunpack.c.l.b16 %v536
        %v761 = vunpack.c.l.b16 %v537
        %v762 = vunpack.c.l.b16 %v538
        %v763 = vunpack.c.l.b16 %v539
        %v764 = vunpack.c.l.b16 %v540
        %v765 = vunpack.c.l.b16 %v541
        %v766 = vunpack.c.l.b16 %v542
        %v767 = vunpack.c.l.b16 %v543
        %v768 = vunpack.c.l.b16 %v544
        %v769 = vpack.c.b16 %v738, %v737
        %v770 = vpack.c.b16 %v740, %v739
        %v771 = vpack.c.b16 %v742, %v741
        %v772 = vpack.c.b16 %v744, %v743
        %v773 = vpack.c.b16 %v746, %v745
        %v774 = vpack.c.b16 %v748, %v747
        %v775 = vpack.c.b16 %v750, %v749
        %v776 = vpack.c.b16 %v752, %v751
        %v777 = vpack.c.b16 %v754, %v753
        %v778 = vpack.c.b16 %v756, %v755
        %v779 = vpack.c.b16 %v758, %v757
        %v780 = vpack.c.b16 %v760, %v759
        %v781 = vpack.c.b16 %v762, %v761
        %v782 = vpack.c.b16 %v764, %v763
        %v783 = vpack.c.b16 %v766, %v765
        %v784 = vpack.c.b16 %v768, %v767
        %801 = vmatprep.subr.bf16.mxu0 0
        %802 = vmatpush1.bf16.msra.mxu0 %v769
        %803 = vmatprep.subr.bf16.mxu0 0
        %804 = vmatpush1.bf16.msra.mxu0 %v770
        %805 = vmatprep.subr.bf16.mxu0 0
        %806 = vmatpush1.bf16.msra.mxu0 %v771
        %807 = vmatprep.subr.bf16.mxu0 0
        %808 = vmatpush1.bf16.msra.mxu0 %v772
        %809 = vmatprep.subr.bf16.mxu0 0
        %810 = vmatpush1.bf16.msra.mxu0 %v773
        %811 = vmatprep.subr.bf16.mxu0 0
        %812 = vmatpush1.bf16.msra.mxu0 %v774
        %813 = vmatprep.subr.bf16.mxu0 0
        %814 = vmatpush1.bf16.msra.mxu0 %v775
        %815 = vmatprep.subr.bf16.mxu0 0
        %816 = vmatpush1.bf16.msra.mxu0 %v776
        %817 = vmatprep.subr.bf16.mxu0 0
        %818 = vmatpush1.bf16.msra.mxu0 %v777
        %819 = vmatprep.subr.bf16.mxu0 0
        %820 = vmatpush1.bf16.msra.mxu0 %v778
        %821 = vmatprep.subr.bf16.mxu0 0
        %822 = vmatpush1.bf16.msra.mxu0 %v779
        %823 = vmatprep.subr.bf16.mxu0 0
        %824 = vmatpush1.bf16.msra.mxu0 %v780
        %825 = vmatprep.subr.bf16.mxu0 0
        %826 = vmatpush1.bf16.msra.mxu0 %v781
        %827 = vmatprep.subr.bf16.mxu0 0
        %828 = vmatpush1.bf16.msra.mxu0 %v782
        %829 = vmatprep.subr.bf16.mxu0 0
        %830 = vmatpush1.bf16.msra.mxu0 %v783
        %831 = vmatprep.subr.bf16.mxu0 0
        %832 = vmatpush1.bf16.msra.mxu0 %v784
        %833 = vmatprep.mubr.bf16.mxu0 %v642
        %834 = vmatmul.mubr.bf16.gmra.mrb[0].mxu0 %v641
        %v835 = vpop.f32.mrb[0].mxu0
        %v836 = vadd.f32 0.0, %v835
        %v837 = vpop.f32.mrb[0].mxu0
        %v838 = vpop.f32.mrb[0].mxu0
        %v839 = vadd.f32 0.0, %v838
        %v840 = vpop.f32.mrb[0].mxu0
        %841 = vmatprep.mubr.bf16.mxu0 %v644
        %842 = vmatmul.mubr.bf16.gmra.mrb[0].mxu0 %v643
        %v843 = vpop.f32.mrb[0].mxu0
        %v844 = vadd.f32 0.0, %v843
        %v845 = vpop.f32.mrb[0].mxu0
        %v846 = vpop.f32.mrb[0].mxu0
        %v847 = vadd.f32 0.0, %v846
        %v848 = vpop.f32.mrb[0].mxu0
        %849 = vmatprep.mubr.bf16.mxu0 %v646
        %850 = vmatmul.mubr.bf16.gmra.mrb[0].mxu0 %v645
        %v851 = vpop.f32.mrb[0].mxu0
        %v852 = vadd.f32 0.0, %v851
        %v853 = vpop.f32.mrb[0].mxu0
        %v854 = vpop.f32.mrb[0].mxu0
        %v855 = vadd.f32 0.0, %v854
        %v856 = vpop.f32.mrb[0].mxu0
        %857 = vmatprep.mubr.bf16.mxu0 %v648
        %858 = vmatmul.mubr.bf16.gmra.mrb[0].mxu0 %v647
        %v859 = vpop.f32.mrb[0].mxu0
        %v860 = vadd.f32 0.0, %v859
        %v861 = vpop.f32.mrb[0].mxu0
        %v862 = vpop.f32.mrb[0].mxu0
        %v863 = vadd.f32 0.0, %v862
        %v864 = vpop.f32.mrb[0].mxu0
        %865 = vmatprep.mubr.bf16.mxu0 %v650
        %866 = vmatmul.mubr.bf16.gmra.mrb[0].mxu0 %v649
        %v867 = vpop.f32.mrb[0].mxu0
        %v868 = vadd.f32 0.0, %v867
        %v869 = vpop.f32.mrb[0].mxu0
        %v870 = vpop.f32.mrb[0].mxu0
        %v871 = vadd.f32 0.0, %v870
        %v872 = vpop.f32.mrb[0].mxu0
        %873 = vmatprep.mubr.bf16.mxu0 %v652
        %874 = vmatmul.mubr.bf16.gmra.mrb[0].mxu0 %v651
        %v875 = vpop.f32.mrb[0].mxu0
        %v876 = vadd.f32 0.0, %v875
        %v877 = vpop.f32.mrb[0].mxu0
        %v878 = vpop.f32.mrb[0].mxu0
        %v879 = vadd.f32 0.0, %v878
        %v880 = vpop.f32.mrb[0].mxu0
        %881 = vmatprep.mubr.bf16.mxu0 %v654
        %882 = vmatmul.mubr.bf16.gmra.mrb[0].mxu0 %v653
        %v883 = vpop.f32.mrb[0].mxu0
        %v884 = vadd.f32 0.0, %v883
        %v885 = vpop.f32.mrb[0].mxu0
        %v886 = vpop.f32.mrb[0].mxu0
        %v887 = vadd.f32 0.0, %v886
        %v888 = vpop.f32.mrb[0].mxu0
        %889 = vmatprep.mubr.bf16.mxu0 %v656
        %890 = vmatmul.mubr.bf16.gmra.mrb[0].mxu0 %v655
        %v891 = vpop.f32.mrb[0].mxu0
        %v892 = vadd.f32 0.0, %v891
        %v893 = vpop.f32.mrb[0].mxu0
        %v894 = vpop.f32.mrb[0].mxu0
        %v895 = vadd.f32 0.0, %v894
        %v896 = vpop.f32.mrb[0].mxu0
        %897 = vmatprep.mubr.bf16.mxu0 %v658
        %898 = vmatmul.mubr.bf16.gmra.mrb[0].mxu0 %v657
        %v899 = vpop.f32.mrb[0].mxu0
        %v900 = vadd.f32 0.0, %v899
        %v901 = vpop.f32.mrb[0].mxu0
        %v902 = vpop.f32.mrb[0].mxu0
        %v903 = vadd.f32 0.0, %v902
        %v904 = vpop.f32.mrb[0].mxu0
        %905 = vmatprep.mubr.bf16.mxu0 %v660
        %906 = vmatmul.mubr.bf16.gmra.mrb[0].mxu0 %v659
        %v907 = vpop.f32.mrb[0].mxu0
        %v908 = vadd.f32 0.0, %v907
        %v909 = vpop.f32.mrb[0].mxu0
        %v910 = vpop.f32.mrb[0].mxu0
        %v911 = vadd.f32 0.0, %v910
        %v912 = vpop.f32.mrb[0].mxu0
        %913 = vmatprep.mubr.bf16.mxu0 %v662
        %914 = vmatmul.mubr.bf16.gmra.mrb[0].mxu0 %v661
        %v915 = vpop.f32.mrb[0].mxu0
        %v916 = vadd.f32 0.0, %v915
        %v917 = vpop.f32.mrb[0].mxu0
        %v918 = vpop.f32.mrb[0].mxu0
        %v919 = vadd.f32 0.0, %v918
        %v920 = vpop.f32.mrb[0].mxu0
        %921 = vmatprep.mubr.bf16.mxu0 %v664
        %922 = vmatmul.mubr.bf16.gmra.mrb[0].mxu0 %v663
        %v923 = vpop.f32.mrb[0].mxu0
        %v924 = vadd.f32 0.0, %v923
        %v925 = vpop.f32.mrb[0].mxu0
        %v926 = vpop.f32.mrb[0].mxu0
        %v927 = vadd.f32 0.0, %v926
        %v928 = vpop.f32.mrb[0].mxu0
        %929 = vmatprep.mubr.bf16.mxu0 %v666
        %930 = vmatmul.mubr.bf16.gmra.mrb[0].mxu0 %v665
        %v931 = vpop.f32.mrb[0].mxu0
        %v932 = vadd.f32 0.0, %v931
        %v933 = vpop.f32.mrb[0].mxu0
        %v934 = vpop.f32.mrb[0].mxu0
        %v935 = vadd.f32 0.0, %v934
        %v936 = vpop.f32.mrb[0].mxu0
        %937 = vmatprep.mubr.bf16.mxu0 %v668
        %938 = vmatmul.mubr.bf16.gmra.mrb[0].mxu0 %v667
        %v939 = vpop.f32.mrb[0].mxu0
        %v940 = vadd.f32 0.0, %v939
        %v941 = vpop.f32.mrb[0].mxu0
        %v942 = vpop.f32.mrb[0].mxu0
        %v943 = vadd.f32 0.0, %v942
        %v944 = vpop.f32.mrb[0].mxu0
        %945 = vmatprep.mubr.bf16.mxu0 %v670
        %946 = vmatmul.mubr.bf16.gmra.mrb[0].mxu0 %v669
        %v947 = vpop.f32.mrb[0].mxu0
        %v948 = vadd.f32 0.0, %v947
        %v949 = vpop.f32.mrb[0].mxu0
        %v950 = vpop.f32.mrb[0].mxu0
        %v951 = vadd.f32 0.0, %v950
        %v952 = vpop.f32.mrb[0].mxu0
        %953 = vmatprep.mubr.bf16.mxu0 %v672
        %954 = vmatmul.mubr.bf16.gmra.mrb[0].mxu0 %v671
        %v955 = vpop.f32.mrb[0].mxu0
        %v956 = vadd.f32 0.0, %v955
        %v957 = vpop.f32.mrb[0].mxu0
        %v958 = vpop.f32.mrb[0].mxu0
        %v959 = vadd.f32 0.0, %v958
        %v960 = vpop.f32.mrb[0].mxu0
        %961 = vdwg.mxu0
        %v962 = vadd.f32 %v449, %v836
        %v963 = vadd.f32 %v450, %v839
        %v964 = vadd.f32 %v451, %v844
        %v965 = vadd.f32 %v452, %v847
        %v966 = vadd.f32 %v453, %v852
        %v967 = vadd.f32 %v454, %v855
        %v968 = vadd.f32 %v455, %v860
        %v969 = vadd.f32 %v456, %v863
        %v970 = vadd.f32 %v457, %v868
        %v971 = vadd.f32 %v458, %v871
        %v972 = vadd.f32 %v459, %v876
        %v973 = vadd.f32 %v460, %v879
        %v974 = vadd.f32 %v461, %v884
        %v975 = vadd.f32 %v462, %v887
        %v976 = vadd.f32 %v463, %v892
        %v977 = vadd.f32 %v464, %v895
        %v978 = vadd.f32 %v465, %v900
        %v979 = vadd.f32 %v466, %v903
        %v980 = vadd.f32 %v467, %v908
        %v981 = vadd.f32 %v468, %v911
        %v982 = vadd.f32 %v469, %v916
        %v983 = vadd.f32 %v470, %v919
        %v984 = vadd.f32 %v471, %v924
        %v985 = vadd.f32 %v472, %v927
        %v986 = vadd.f32 %v473, %v932
        %v987 = vadd.f32 %v474, %v935
        %v988 = vadd.f32 %v475, %v940
        %v989 = vadd.f32 %v476, %v943
        %v990 = vadd.f32 %v477, %v948
        %v991 = vadd.f32 %v478, %v951
        %v992 = vadd.f32 %v479, %v956
        %v993 = vadd.f32 %v480, %v959
        %994 = vst [vmem:[#allocation2] sm:$0xff] %v962
        %995 = vst [vmem:[#allocation2 + $0x8] sm:$0xff] %v963
        %996 = vst [vmem:[#allocation2 + $0x10] sm:$0xff] %v964
        %997 = vst [vmem:[#allocation2 + $0x18] sm:$0xff] %v965
        %998 = vst [vmem:[#allocation2 + $0x20] sm:$0xff] %v966
        %999 = vst [vmem:[#allocation2 + $0x28] sm:$0xff] %v967
        %1000 = vst [vmem:[#allocation2 + $0x30] sm:$0xff] %v968
        %1001 = vst [vmem:[#allocation2 + $0x38] sm:$0xff] %v969
        %1002 = vst [vmem:[#allocation2 + $0x40] sm:$0xff] %v970
        %1003 = vst [vmem:[#allocation2 + $0x48] sm:$0xff] %v971
        %1004 = vst [vmem:[#allocation2 + $0x50] sm:$0xff] %v972
        %1005 = vst [vmem:[#allocation2 + $0x58] sm:$0xff] %v973
        %1006 = vst [vmem:[#allocation2 + $0x60] sm:$0xff] %v974
        %1007 = vst [vmem:[#allocation2 + $0x68] sm:$0xff] %v975
        %1008 = vst [vmem:[#allocation2 + $0x70] sm:$0xff] %v976
        %1009 = vst [vmem:[#allocation2 + $0x78] sm:$0xff] %v977
        %1010 = vst [vmem:[#allocation2 + $0x80] sm:$0xff] %v978
        %1011 = vst [vmem:[#allocation2 + $0x88] sm:$0xff] %v979
        %1012 = vst [vmem:[#allocation2 + $0x90] sm:$0xff] %v980
        %1013 = vst [vmem:[#allocation2 + $0x98] sm:$0xff] %v981
        %1014 = vst [vmem:[#allocation2 + $0xa0] sm:$0xff] %v982
        %1015 = vst [vmem:[#allocation2 + $0xa8] sm:$0xff] %v983
        %1016 = vst [vmem:[#allocation2 + $0xb0] sm:$0xff] %v984
        %1017 = vst [vmem:[#allocation2 + $0xb8] sm:$0xff] %v985
        %1018 = vst [vmem:[#allocation2 + $0xc0] sm:$0xff] %v986
        %1019 = vst [vmem:[#allocation2 + $0xc8] sm:$0xff] %v987
        %1020 = vst [vmem:[#allocation2 + $0xd0] sm:$0xff] %v988
        %1021 = vst [vmem:[#allocation2 + $0xd8] sm:$0xff] %v989
        %1022 = vst [vmem:[#allocation2 + $0xe0] sm:$0xff] %v990
        %1023 = vst [vmem:[#allocation2 + $0xe8] sm:$0xff] %v991
        %1024 = vst [vmem:[#allocation2 + $0xf0] sm:$0xff] %v992
        %1025 = vst [vmem:[#allocation2 + $0xf8] sm:$0xff] %v993
        %p1026 = scmp.eq.s32.totalorder %s21, 1
        // Predicated region
        $region75: #{matmul_bias_act.1} parent=65 // pred_check
          %p1027 = pneg %p1026
        $region76: #{matmul_bias_act.1} parent=65 // pred_check_branch
          %1029 = sbr.rel (%p1027) target = $region78
        $region77: #{matmul_bias_act.1} parent=65 // pred_region
          %v1030 = vld [vmem:[#allocation2] sm:$0xff]
          %v1031 = vld [vmem:[#allocation2 + $0x8] sm:$0xff]
          %v1032 = vld [vmem:[#allocation2 + $0x10] sm:$0xff]
          %v1033 = vld [vmem:[#allocation2 + $0x18] sm:$0xff]
          %v1034 = vld [vmem:[#allocation2 + $0x20] sm:$0xff]
          %v1035 = vld [vmem:[#allocation2 + $0x28] sm:$0xff]
          %v1036 = vld [vmem:[#allocation2 + $0x30] sm:$0xff]
          %v1037 = vld [vmem:[#allocation2 + $0x38] sm:$0xff]
          %v1038 = vld [vmem:[#allocation2 + $0x40] sm:$0xff]
          %v1039 = vld [vmem:[#allocation2 + $0x48] sm:$0xff]
          %v1040 = vld [vmem:[#allocation2 + $0x50] sm:$0xff]
          %v1041 = vld [vmem:[#allocation2 + $0x58] sm:$0xff]
          %v1042 = vld [vmem:[#allocation2 + $0x60] sm:$0xff]
          %v1043 = vld [vmem:[#allocation2 + $0x68] sm:$0xff]
          %v1044 = vld [vmem:[#allocation2 + $0x70] sm:$0xff]
          %v1045 = vld [vmem:[#allocation2 + $0x78] sm:$0xff]
          %v1046 = vld [vmem:[#allocation2 + $0x80] sm:$0xff]
          %v1047 = vld [vmem:[#allocation2 + $0x88] sm:$0xff]
          %v1048 = vld [vmem:[#allocation2 + $0x90] sm:$0xff]
          %v1049 = vld [vmem:[#allocation2 + $0x98] sm:$0xff]
          %v1050 = vld [vmem:[#allocation2 + $0xa0] sm:$0xff]
          %v1051 = vld [vmem:[#allocation2 + $0xa8] sm:$0xff]
          %v1052 = vld [vmem:[#allocation2 + $0xb0] sm:$0xff]
          %v1053 = vld [vmem:[#allocation2 + $0xb8] sm:$0xff]
          %v1054 = vld [vmem:[#allocation2 + $0xc0] sm:$0xff]
          %v1055 = vld [vmem:[#allocation2 + $0xc8] sm:$0xff]
          %v1056 = vld [vmem:[#allocation2 + $0xd0] sm:$0xff]
          %v1057 = vld [vmem:[#allocation2 + $0xd8] sm:$0xff]
          %v1058 = vld [vmem:[#allocation2 + $0xe0] sm:$0xff]
          %v1059 = vld [vmem:[#allocation2 + $0xe8] sm:$0xff]
          %v1060 = vld [vmem:[#allocation2 + $0xf0] sm:$0xff]
          %v1061 = vld [vmem:[#allocation2 + $0xf8] sm:$0xff]
          %v1062 = vld [vmem:[%s402] sm:$0x1]
          %v1064 = vlaneseq
          %v1065 = vshrl.u32 %v1064, 7
          %v1066 = vsub.s32 0, %v1065
          %v1067 = vrot.slane %v1062, %v1066
          %v1069 = vadd.f32 %v1030, %v1067
          %v1070 = vadd.f32 %v1031, %v1067
          %v1071 = vadd.f32 %v1032, %v1067
          %v1072 = vadd.f32 %v1033, %v1067
          %v1073 = vadd.f32 %v1034, %v1067
          %v1074 = vadd.f32 %v1035, %v1067
          %v1075 = vadd.f32 %v1036, %v1067
          %v1076 = vadd.f32 %v1037, %v1067
          %v1077 = vadd.f32 %v1038, %v1067
          %v1078 = vadd.f32 %v1039, %v1067
          %v1079 = vadd.f32 %v1040, %v1067
          %v1080 = vadd.f32 %v1041, %v1067
          %v1081 = vadd.f32 %v1042, %v1067
          %v1082 = vadd.f32 %v1043, %v1067
          %v1083 = vadd.f32 %v1044, %v1067
          %v1084 = vadd.f32 %v1045, %v1067
          %v1085 = vadd.f32 %v1046, %v1067
          %v1086 = vadd.f32 %v1047, %v1067
          %v1087 = vadd.f32 %v1048, %v1067
          %v1088 = vadd.f32 %v1049, %v1067
          %v1089 = vadd.f32 %v1050, %v1067
          %v1090 = vadd.f32 %v1051, %v1067
          %v1091 = vadd.f32 %v1052, %v1067
          %v1092 = vadd.f32 %v1053, %v1067
          %v1093 = vadd.f32 %v1054, %v1067
          %v1094 = vadd.f32 %v1055, %v1067
          %v1095 = vadd.f32 %v1056, %v1067
          %v1096 = vadd.f32 %v1057, %v1067
          %v1097 = vadd.f32 %v1058, %v1067
          %v1098 = vadd.f32 %v1059, %v1067
          %v1099 = vadd.f32 %v1060, %v1067
          %v1100 = vadd.f32 %v1061, %v1067
          %v1101 = vmax.f32 %v1069, 0.0
          %v1102 = vmax.f32 %v1070, 0.0
          %v1103 = vmax.f32 %v1071, 0.0
          %v1104 = vmax.f32 %v1072, 0.0
          %v1105 = vmax.f32 %v1073, 0.0
          %v1106 = vmax.f32 %v1074, 0.0
          %v1107 = vmax.f32 %v1075, 0.0
          %v1108 = vmax.f32 %v1076, 0.0
          %v1109 = vmax.f32 %v1077, 0.0
          %v1110 = vmax.f32 %v1078, 0.0
          %v1111 = vmax.f32 %v1079, 0.0
          %v1112 = vmax.f32 %v1080, 0.0
          %v1113 = vmax.f32 %v1081, 0.0
          %v1114 = vmax.f32 %v1082, 0.0
          %v1115 = vmax.f32 %v1083, 0.0
          %v1116 = vmax.f32 %v1084, 0.0
          %v1117 = vmax.f32 %v1085, 0.0
          %v1118 = vmax.f32 %v1086, 0.0
          %v1119 = vmax.f32 %v1087, 0.0
          %v1120 = vmax.f32 %v1088, 0.0
          %v1121 = vmax.f32 %v1089, 0.0
          %v1122 = vmax.f32 %v1090, 0.0
          %v1123 = vmax.f32 %v1091, 0.0
          %v1124 = vmax.f32 %v1092, 0.0
          %v1125 = vmax.f32 %v1093, 0.0
          %v1126 = vmax.f32 %v1094, 0.0
          %v1127 = vmax.f32 %v1095, 0.0
          %v1128 = vmax.f32 %v1096, 0.0
          %v1129 = vmax.f32 %v1097, 0.0
          %v1130 = vmax.f32 %v1098, 0.0
          %v1131 = vmax.f32 %v1099, 0.0
          %v1132 = vmax.f32 %v1100, 0.0
          %v1133 = vpack.c.bf16 %v1102, %v1101
          %v1134 = vpack.c.bf16 %v1104, %v1103
          %v1135 = vpack.c.bf16 %v1106, %v1105
          %v1136 = vpack.c.bf16 %v1108, %v1107
          %v1137 = vpack.c.bf16 %v1110, %v1109
          %v1138 = vpack.c.bf16 %v1112, %v1111
          %v1139 = vpack.c.bf16 %v1114, %v1113
          %v1140 = vpack.c.bf16 %v1116, %v1115
          %v1141 = vpack.c.bf16 %v1118, %v1117
          %v1142 = vpack.c.bf16 %v1120, %v1119
          %v1143 = vpack.c.bf16 %v1122, %v1121
          %v1144 = vpack.c.bf16 %v1124, %v1123
          %v1145 = vpack.c.bf16 %v1126, %v1125
          %v1146 = vpack.c.bf16 %v1128, %v1127
          %v1147 = vpack.c.bf16 %v1130, %v1129
          %v1148 = vpack.c.bf16 %v1132, %v1131
          %v1165 = vunpack.c.l.b16 %v1133
          %v1166 = vunpack.c.h.b16 %v1133
          %v1167 = vunpack.c.l.b16 %v1134
          %v1168 = vunpack.c.h.b16 %v1134
          %v1169 = vunpack.c.l.b16 %v1135
          %v1170 = vunpack.c.h.b16 %v1135
          %v1171 = vunpack.c.l.b16 %v1136
          %v1172 = vunpack.c.h.b16 %v1136
          %v1173 = vunpack.c.l.b16 %v1137
          %v1174 = vunpack.c.h.b16 %v1137
          %v1175 = vunpack.c.l.b16 %v1138
          %v1176 = vunpack.c.h.b16 %v1138
          %v1177 = vunpack.c.l.b16 %v1139
          %v1178 = vunpack.c.h.b16 %v1139
          %v1179 = vunpack.c.l.b16 %v1140
          %v1180 = vunpack.c.h.b16 %v1140
          %v1181 = vunpack.c.l.b16 %v1141
          %v1182 = vunpack.c.h.b16 %v1141
          %v1183 = vunpack.c.l.b16 %v1142
          %v1184 = vunpack.c.h.b16 %v1142
          %v1185 = vunpack.c.l.b16 %v1143
          %v1186 = vunpack.c.h.b16 %v1143
          %v1187 = vunpack.c.l.b16 %v1144
          %v1188 = vunpack.c.h.b16 %v1144
          %v1189 = vunpack.c.l.b16 %v1145
          %v1190 = vunpack.c.h.b16 %v1145
          %v1191 = vunpack.c.l.b16 %v1146
          %v1192 = vunpack.c.h.b16 %v1146
          %v1193 = vunpack.c.l.b16 %v1147
          %v1194 = vunpack.c.h.b16 %v1147
          %v1195 = vunpack.c.l.b16 %v1148
          %v1196 = vunpack.c.h.b16 %v1148
          %v1197 = vpack.c.b16 %v1165, %v1165
          %v1198 = vpack.c.b16 %v1166, %v1166
          %v1199 = vpack.c.b16 %v1167, %v1167
          %v1200 = vpack.c.b16 %v1168, %v1168
          %v1201 = vpack.c.b16 %v1169, %v1169
          %v1202 = vpack.c.b16 %v1170, %v1170
          %v1203 = vpack.c.b16 %v1171, %v1171
          %v1204 = vpack.c.b16 %v1172, %v1172
          %v1205 = vpack.c.b16 %v1173, %v1173
          %v1206 = vpack.c.b16 %v1174, %v1174
          %v1207 = vpack.c.b16 %v1175, %v1175
          %v1208 = vpack.c.b16 %v1176, %v1176
          %v1209 = vpack.c.b16 %v1177, %v1177
          %v1210 = vpack.c.b16 %v1178, %v1178
          %v1211 = vpack.c.b16 %v1179, %v1179
          %v1212 = vpack.c.b16 %v1180, %v1180
          %v1213 = vpack.c.b16 %v1181, %v1181
          %v1214 = vpack.c.b16 %v1182, %v1182
          %v1215 = vpack.c.b16 %v1183, %v1183
          %v1216 = vpack.c.b16 %v1184, %v1184
          %v1217 = vpack.c.b16 %v1185, %v1185
          %v1218 = vpack.c.b16 %v1186, %v1186
          %v1219 = vpack.c.b16 %v1187, %v1187
          %v1220 = vpack.c.b16 %v1188, %v1188
          %v1221 = vpack.c.b16 %v1189, %v1189
          %v1222 = vpack.c.b16 %v1190, %v1190
          %v1223 = vpack.c.b16 %v1191, %v1191
          %v1224 = vpack.c.b16 %v1192, %v1192
          %v1225 = vpack.c.b16 %v1193, %v1193
          %v1226 = vpack.c.b16 %v1194, %v1194
          %v1227 = vpack.c.b16 %v1195, %v1195
          %v1228 = vpack.c.b16 %v1196, %v1196
          %1261 = vst [vmem:[%s410] sm:$0xf] %v1197
          %1262 = vst [vmem:[%s410 + $0x4] sm:$0xf] %v1198
          %1263 = vst [vmem:[%s410 + $0x8] sm:$0xf] %v1199
          %1264 = vst [vmem:[%s410 + $0xc] sm:$0xf] %v1200
          %1265 = vst [vmem:[%s410 + $0x10] sm:$0xf] %v1201
          %1266 = vst [vmem:[%s410 + $0x14] sm:$0xf] %v1202
          %1267 = vst [vmem:[%s410 + $0x18] sm:$0xf] %v1203
          %1268 = vst [vmem:[%s410 + $0x1c] sm:$0xf] %v1204
          %1269 = vst [vmem:[%s410 + $0x20] sm:$0xf] %v1205
          %1270 = vst [vmem:[%s410 + $0x24] sm:$0xf] %v1206
          %1271 = vst [vmem:[%s410 + $0x28] sm:$0xf] %v1207
          %1272 = vst [vmem:[%s410 + $0x2c] sm:$0xf] %v1208
          %1273 = vst [vmem:[%s410 + $0x30] sm:$0xf] %v1209
          %1274 = vst [vmem:[%s410 + $0x34] sm:$0xf] %v1210
          %1275 = vst [vmem:[%s410 + $0x38] sm:$0xf] %v1211
          %1276 = vst [vmem:[%s410 + $0x3c] sm:$0xf] %v1212
          %1277 = vst [vmem:[%s410 + $0x40] sm:$0xf] %v1213
          %1278 = vst [vmem:[%s410 + $0x44] sm:$0xf] %v1214
          %1279 = vst [vmem:[%s410 + $0x48] sm:$0xf] %v1215
          %1280 = vst [vmem:[%s410 + $0x4c] sm:$0xf] %v1216
          %1281 = vst [vmem:[%s410 + $0x50] sm:$0xf] %v1217
          %1282 = vst [vmem:[%s410 + $0x54] sm:$0xf] %v1218
          %1283 = vst [vmem:[%s410 + $0x58] sm:$0xf] %v1219
          %1284 = vst [vmem:[%s410 + $0x5c] sm:$0xf] %v1220
          %1285 = vst [vmem:[%s410 + $0x60] sm:$0xf] %v1221
          %1286 = vst [vmem:[%s410 + $0x64] sm:$0xf] %v1222
          %1287 = vst [vmem:[%s410 + $0x68] sm:$0xf] %v1223
          %1288 = vst [vmem:[%s410 + $0x6c] sm:$0xf] %v1224
          %1289 = vst [vmem:[%s410 + $0x70] sm:$0xf] %v1225
          %1290 = vst [vmem:[%s410 + $0x74] sm:$0xf] %v1226
          %1291 = vst [vmem:[%s410 + $0x78] sm:$0xf] %v1227
          %1292 = vst [vmem:[%s410 + $0x7c] sm:$0xf] %v1228
        $region78: #{matmul_bias_act.1} parent=65 // pred_fallthru
          _
        %s1293 = smul.u32 32, %s19
        %p1294 = scmp.lt.s32.totalorder %s1293, 255
        %s1295 = scalar_select %p1294, %s1293, 255
        %p1296 = scmp.lt.s32.totalorder %s20, 0
        %s1297 = scalar_select %p1296, %s20, 0
        %s1298 = sadd.s32 %s1297, %s1295
        %s1299 = smul.addr %s1298, 4
        %s1300 = scalar_lea.vmem %s3, %s1299
        // Predicated region
        $region79: #{matmul_bias_act.1} parent=65 // pred_check
          %p1301 = pneg %p135
        $region80: #{matmul_bias_act.1} parent=65 // pred_check_branch
          %1303 = sbr.rel (%p1301) target = $region82
        $region81: #{matmul_bias_act.1} parent=65 // pred_region
          %s1304 = smul.u32 32, %s19
        $region82: #{matmul_bias_act.1} parent=65 // pred_fallthru
          _
      $region66: #{matmul_bias_act.1} parent=5 // pred_fallthru
        _
      %p1305 = scmp.le.s32.totalorder 2, %s9
      // Predicated region
      $region83: #{matmul_bias_act.1} parent=5 // pred_check
        %p1306 = pneg %p1305
      $region84: #{matmul_bias_act.1} parent=5 // pred_check_branch
        %1308 = sbr.rel (%p1306) target = $region86
      $region85: #{matmul_bias_act.1} parent=5 // pred_region
        %s1309 = ssub.s32 %s9, 2
        // Predicated region
        $region87: #{matmul_bias_act.1} parent=85 // pred_check
          %p1310 = pneg %p141
        $region88: #{matmul_bias_act.1} parent=85 // pred_check_branch
          %1312 = sbr.rel (%p1310) target = $region90
        $region89: #{matmul_bias_act.1} parent=85 // pred_region
          %s1313 = smul.u32 32, %s22
          %p1314 = scmp.lt.s32.totalorder %s1313, 255
          %s1315 = scalar_select %p1314, %s1313, 255
          %p1316 = scmp.lt.s32.totalorder %s23, 0
          %s1317 = scalar_select %p1316, %s23, 0
          %s1318 = sadd.s32 %s1317, %s1315
          %s1319 = smul.addr %s1318, 4
          %s1320 = scalar_lea.vmem %s3, %s1319
        $region90: #{matmul_bias_act.1} parent=85 // pred_fallthru
          _
      $region86: #{matmul_bias_act.1} parent=5 // pred_fallthru
        _
    $region6: #{matmul_bias_act.1} parent=1 // loop_footer
      %s13 = sadd.s32 1, %s9
    $region7: #{matmul_bias_act.1} parent=1 // loop_footer_branch
      %8 = sbr.rel target = $region3
    $region8: #{matmul_bias_act.1} parent=1 // loop_exit
      _

</llo_original>
